<compile_context>
chip_gen: v7x
topology: tpu7x:2x2x1
jax: 0.10.0
libtpu: 0.0.40
codegen_flags: <defaults>
</compile_context>

<pallas_src>
import functools

import jax
import jax.numpy as jnp
from jax.experimental import pallas as pl
from jax.experimental.pallas import tpu as pltpu


# ----------------------------- Pallas kernel ------------------------------- #
def _conv1x1_kernel(x_ref, w_ref, b_ref, o_ref):
    # x_ref: (1, Cin, TM)   activation tile, flattened spatial on lanes
    # w_ref: (Cout, Cin)    full weight, resident in VMEM for every grid step
    # b_ref: (Cout, 1)      bias column
    # o_ref: (1, Cout, TM)  lane-dense output tile
    x = x_ref[0]                                                   # (Cin, TM)
    acc = jnp.dot(w_ref[...], x, preferred_element_type=jnp.float32)
    o_ref[0] = (acc + b_ref[...]).astype(o_ref.dtype)


def conv1x1_nchw(x_nchw, w, b, *, tm_max=1024):
    """1x1 conv with bias, NCHW in / NCHW out.

    x_nchw: (N, Cin, H, W); w: (Cout, Cin) (torch conv weight squeezed);
    b: (Cout,).  out[n] = w @ x[n] + b with the flattened H*W axis on the TPU
    lane dimension (lane-dense stores).
    """
    N, Cin, H, W = x_nchw.shape
    Cout = w.shape[0]
    HW = H * W

    # Lane tile: full spatial extent when small (a full-extent block is always
    # legal regardless of alignment), otherwise tm_max (a multiple of 128).
    # Ragged tails (only possible when HW > tm_max) are masked by Pallas via
    # the cdiv grid -- no divisibility assert needed.
    tm = HW if HW <= tm_max else tm_max

    x3 = x_nchw.reshape(N, Cin, HW)
    b2 = b.reshape(Cout, 1)

    out = pl.pallas_call(
        _conv1x1_kernel,
        out_shape=jax.ShapeDtypeStruct((N, Cout, HW), x_nchw.dtype),
        grid_spec=pltpu.PrefetchScalarGridSpec(
            num_scalar_prefetch=0,
            grid=(N, pl.cdiv(HW, tm)),
            in_specs=[
                pl.BlockSpec((1, Cin, tm), lambda n, m: (n, 0, m)),
                pl.BlockSpec((Cout, Cin), lambda n, m: (0, 0)),
                pl.BlockSpec((Cout, 1), lambda n, m: (0, 0)),
            ],
            out_specs=pl.BlockSpec((1, Cout, tm), lambda n, m: (n, 0, m)),
        ),
        compiler_params=pltpu.CompilerParams(
            dimension_semantics=("parallel", "parallel")),
    )(x3, w, b2)
    return out.reshape(N, Cout, H, W)


# ------------------------------- JAX glue ----------------------------------- #
def pixel_unshuffle_nchw(x, r=2):
    """nn.PixelUnshuffle(r) semantics in NCHW:
       out[n, c*r*r + i*r + j, h, w] = in[n, c, h*r + i, w*r + j]."""
    N, C, H, W = x.shape
    x = x.reshape(N, C, H // r, r, W // r, r)
    x = jnp.transpose(x, (0, 1, 3, 5, 2, 4))
    return x.reshape(N, C * r * r, H // r, W // r)


def init_params(key, in_nc, nf, scale, dtype=jnp.float32):
    params = {}
    keys = jax.random.split(key, 10)

    def mk(kw, kb, cout, cin):
        w = jax.random.normal(kw, (cout, cin), dtype) * 0.1
        b = jax.random.normal(kb, (cout,), dtype) * 0.01
        return w, b

    if scale >= 1:
        params["down1_w"], params["down1_b"] = mk(keys[0], keys[1], nf, in_nc)
    if scale >= 2:
        params["down2_w"], params["down2_b"] = mk(keys[2], keys[3], nf // 4, nf)
    if scale >= 4:
        params["down4_w"], params["down4_b"] = mk(keys[4], keys[5], nf // 4, nf)
    if scale >= 8:
        params["down8_w"], params["down8_b"] = mk(keys[6], keys[7], nf // 4, nf)
    if scale >= 16:
        params["down16_w"], params["down16_b"] = mk(keys[8], keys[9], nf // 4, nf)
    return params


@functools.partial(jax.jit, static_argnames=("scale",))
def injector_net_forward(x_nchw, params, scale):
    N, C, H, W = x_nchw.shape
    if scale >= 2:
        div = min(scale, 16)
        if (H % div) or (W % div):
            raise ValueError(
                f"H={H}, W={W} must be divisible by {div} for scale={scale}")

    fea1 = fea2 = fea4 = fea8 = fea16 = None
    if scale >= 1:
        fea1 = conv1x1_nchw(x_nchw, params["down1_w"], params["down1_b"])
    if scale >= 2:
        fea2 = pixel_unshuffle_nchw(
            conv1x1_nchw(fea1, params["down2_w"], params["down2_b"]))
    if scale >= 4:
        fea4 = pixel_unshuffle_nchw(
            conv1x1_nchw(fea2, params["down4_w"], params["down4_b"]))
    if scale >= 8:
        fea8 = pixel_unshuffle_nchw(
            conv1x1_nchw(fea4, params["down8_w"], params["down8_b"]))
    if scale >= 16:
        fea16 = pixel_unshuffle_nchw(
            conv1x1_nchw(fea8, params["down16_w"], params["down16_b"]))

    return {
        "fea_down1": fea1,
        "fea_down2": fea2,
        "fea_down4": fea4,
        "fea_down8": fea8,
        "fea_down16": fea16,
    }


# ---------------------- pure-JAX NCHW reference (check) --------------------- #
def _ref_conv1x1_nchw(x, w, b):
    return jnp.einsum("nchw,oc->nohw", x, w) + b[None, :, None, None]


def _ref_pixel_unshuffle_nchw(x, r=2):
    N, C, H, W = x.shape
    x = x.reshape(N, C, H // r, r, W // r, r)
    x = jnp.transpose(x, (0, 1, 3, 5, 2, 4))
    return x.reshape(N, C * r * r, H // r, W // r)


def _ref_forward(x, params, scale):
    out = {"fea_down1": None, "fea_down2": None, "fea_down4": None,
           "fea_down8": None, "fea_down16": None}
    if scale >= 1:
        out["fea_down1"] = _ref_conv1x1_nchw(x, params["down1_w"], params["down1_b"])
    if scale >= 2:
        out["fea_down2"] = _ref_pixel_unshuffle_nchw(
            _ref_conv1x1_nchw(out["fea_down1"], params["down2_w"], params["down2_b"]))
    if scale >= 4:
        out["fea_down4"] = _ref_pixel_unshuffle_nchw(
            _ref_conv1x1_nchw(out["fea_down2"], params["down4_w"], params["down4_b"]))
    if scale >= 8:
        out["fea_down8"] = _ref_pixel_unshuffle_nchw(
            _ref_conv1x1_nchw(out["fea_down4"], params["down8_w"], params["down8_b"]))
    if scale >= 16:
        out["fea_down16"] = _ref_pixel_unshuffle_nchw(
            _ref_conv1x1_nchw(out["fea_down8"], params["down16_w"], params["down16_b"]))
    return out


if __name__ == "__main__":
    # Small shapes consistent with the module: NCHW input, scale=16 exercises
    # every branch (down1..down16).
    N, in_nc, H, W = 2, 4, 16, 16
    nf, scale = 32, 16

    key = jax.random.PRNGKey(0)
    kx, kp = jax.random.split(key)
    x = jax.random.normal(kx, (N, in_nc, H, W), jnp.float32)
    params = init_params(kp, in_nc, nf, scale)

    results = injector_net_forward(x, params, scale)
    results = jax.tree_util.tree_map(jax.block_until_ready, results)

    ref = _ref_forward(x, params, scale)
    for name in ("fea_down1", "fea_down2", "fea_down4", "fea_down8", "fea_down16"):
        got, exp = results[name], ref[name]
        assert (got is None) == (exp is None), name
        if got is not None:
            assert got.shape == exp.shape, (name, got.shape, exp.shape)
            err = float(jnp.max(jnp.abs(got - exp)))
            assert err < 1e-4, (name, err)

    print("KERNEL_OK")
</pallas_src>

<mosaic_0001>
module attributes {stable_mosaic.version = 11 : i64} {
  func.func @_conv1x1_kernel(%arg0: i32, %arg1: i32, %arg2: memref<1x4x256xf32, #tpu.memory_space<vmem>>, %arg3: memref<32x4xf32, #tpu.memory_space<vmem>>, %arg4: memref<32x1xf32, #tpu.memory_space<vmem>>, %arg5: memref<1x32x256xf32, #tpu.memory_space<vmem>>) attributes {dimension_semantics = [#tpu.dimension_semantics<parallel>, #tpu.dimension_semantics<parallel>], iteration_bounds = array<i64: 2, 1>, scalar_prefetch = 0 : i64, scratch_operands = 0 : i64, tpu.core_type = #tpu.core_type<tc>, window_params = [{transform_indices = @transform_0, window_bounds = array<i64: 1, 4, 256>}, {pipeline_mode = #tpu.pipeline_mode<synchronous>, transform_indices = @transform_1, window_bounds = array<i64: 32, 4>}, {pipeline_mode = #tpu.pipeline_mode<synchronous>, transform_indices = @transform_2, window_bounds = array<i64: 32, 1>}, {transform_indices = @transform_3, window_bounds = array<i64: 1, 32, 256>}]} {
    %c0 = arith.constant 0 : index
    %c0_0 = arith.constant 0 : index
    %c0_1 = arith.constant 0 : index
    %0 = vector.load %arg2[%c0, %c0_0, %c0_1] : memref<1x4x256xf32, #tpu.memory_space<vmem>>, vector<1x4x256xf32>
    %1 = vector.shape_cast %0 : vector<1x4x256xf32> to vector<4x256xf32>
    %c0_2 = arith.constant 0 : index
    %c0_3 = arith.constant 0 : index
    %2 = vector.load %arg3[%c0_2, %c0_3] : memref<32x4xf32, #tpu.memory_space<vmem>>, vector<32x4xf32>
    %cst = arith.constant dense<0.000000e+00> : vector<32x256xf32>
    %3 = tpu.matmul %2, %1, %cst {dimension_numbers = #tpu.dot_dimension_numbers<[1], [0], [0], [1], [0, 0, 1, 1], [], []>} : vector<32x4xf32>, vector<4x256xf32>, vector<32x256xf32> -> vector<32x256xf32>
    %c0_4 = arith.constant 0 : index
    %c0_5 = arith.constant 0 : index
    %4 = vector.load %arg4[%c0_4, %c0_5] : memref<32x1xf32, #tpu.memory_space<vmem>>, vector<32x1xf32>
    %5 = vector.broadcast %4 : vector<32x1xf32> to vector<32x256xf32>
    %6 = arith.addf %3, %5 : vector<32x256xf32>
    %c0_6 = arith.constant 0 : index
    %c0_7 = arith.constant 0 : index
    %c0_8 = arith.constant 0 : index
    %7 = vector.load %arg5[%c0_6, %c0_7, %c0_8] : memref<1x32x256xf32, #tpu.memory_space<vmem>>, vector<1x32x256xf32>
    %8 = vector.shape_cast %7 : vector<1x32x256xf32> to vector<32x256xf32>
    %9 = vector.shape_cast %6 : vector<32x256xf32> to vector<1x32x256xf32>
    tpu.vector_store %arg5[%c0_6, %c0_7, %c0_8], %9 {strides = array<i32>} : memref<1x32x256xf32, #tpu.memory_space<vmem>>, vector<1x32x256xf32>,
    return
  }
  func.func @transform_0(%arg0: i32, %arg1: i32) -> (i32, i32, i32) {
    %c0_i32 = arith.constant 0 : i32
    %c0_i32_0 = arith.constant 0 : i32
    return %arg0, %c0_i32, %arg1 : i32, i32, i32
  }
  func.func @transform_1(%arg0: i32, %arg1: i32) -> (i32, i32) {
    %c0_i32 = arith.constant 0 : i32
    %c0_i32_0 = arith.constant 0 : i32
    %c0_i32_1 = arith.constant 0 : i32
    return %c0_i32, %c0_i32_0 : i32, i32
  }
  func.func @transform_2(%arg0: i32, %arg1: i32) -> (i32, i32) {
    %c0_i32 = arith.constant 0 : i32
    %c0_i32_0 = arith.constant 0 : i32
    %c0_i32_1 = arith.constant 0 : i32
    return %c0_i32, %c0_i32_0 : i32, i32
  }
  func.func @transform_3(%arg0: i32, %arg1: i32) -> (i32, i32, i32) {
    %c0_i32 = arith.constant 0 : i32
    %c0_i32_0 = arith.constant 0 : i32
    return %arg0, %c0_i32, %arg1 : i32, i32, i32
  }
}

module attributes {stable_mosaic.version = 11 : i64} {
  func.func @_conv1x1_kernel(%arg0: i32, %arg1: i32, %arg2: memref<1x32x256xf32, #tpu.memory_space<vmem>>, %arg3: memref<8x32xf32, #tpu.memory_space<vmem>>, %arg4: memref<8x1xf32, #tpu.memory_space<vmem>>, %arg5: memref<1x8x256xf32, #tpu.memory_space<vmem>>) attributes {dimension_semantics = [#tpu.dimension_semantics<parallel>, #tpu.dimension_semantics<parallel>], iteration_bounds = array<i64: 2, 1>, scalar_prefetch = 0 : i64, scratch_operands = 0 : i64, tpu.core_type = #tpu.core_type<tc>, window_params = [{transform_indices = @transform_0, window_bounds = array<i64: 1, 32, 256>}, {pipeline_mode = #tpu.pipeline_mode<synchronous>, transform_indices = @transform_1, window_bounds = array<i64: 8, 32>}, {pipeline_mode = #tpu.pipeline_mode<synchronous>, transform_indices = @transform_2, window_bounds = array<i64: 8, 1>}, {transform_indices = @transform_3, window_bounds = array<i64: 1, 8, 256>}]} {
    %c0 = arith.constant 0 : index
    %c0_0 = arith.constant 0 : index
    %c0_1 = arith.constant 0 : index
    %0 = vector.load %arg2[%c0, %c0_0, %c0_1] : memref<1x32x256xf32, #tpu.memory_space<vmem>>, vector<1x32x256xf32>
    %1 = vector.shape_cast %0 : vector<1x32x256xf32> to vector<32x256xf32>
    %c0_2 = arith.constant 0 : index
    %c0_3 = arith.constant 0 : index
    %2 = vector.load %arg3[%c0_2, %c0_3] : memref<8x32xf32, #tpu.memory_space<vmem>>, vector<8x32xf32>
    %cst = arith.constant dense<0.000000e+00> : vector<8x256xf32>
    %3 = tpu.matmul %2, %1, %cst {dimension_numbers = #tpu.dot_dimension_numbers<[1], [0], [0], [1], [0, 0, 1, 1], [], []>} : vector<8x32xf32>, vector<32x256xf32>, vector<8x256xf32> -> vector<8x256xf32>
    %c0_4 = arith.constant 0 : index
    %c0_5 = arith.constant 0 : index
    %4 = vector.load %arg4[%c0_4, %c0_5] : memref<8x1xf32, #tpu.memory_space<vmem>>, vector<8x1xf32>
    %5 = vector.broadcast %4 : vector<8x1xf32> to vector<8x256xf32>
    %6 = arith.addf %3, %5 : vector<8x256xf32>
    %c0_6 = arith.constant 0 : index
    %c0_7 = arith.constant 0 : index
    %c0_8 = arith.constant 0 : index
    %7 = vector.load %arg5[%c0_6, %c0_7, %c0_8] : memref<1x8x256xf32, #tpu.memory_space<vmem>>, vector<1x8x256xf32>
    %8 = vector.shape_cast %7 : vector<1x8x256xf32> to vector<8x256xf32>
    %9 = vector.shape_cast %6 : vector<8x256xf32> to vector<1x8x256xf32>
    tpu.vector_store %arg5[%c0_6, %c0_7, %c0_8], %9 {strides = array<i32>} : memref<1x8x256xf32, #tpu.memory_space<vmem>>, vector<1x8x256xf32>,
    return
  }
  func.func @transform_0(%arg0: i32, %arg1: i32) -> (i32, i32, i32) {
    %c0_i32 = arith.constant 0 : i32
    %c0_i32_0 = arith.constant 0 : i32
    return %arg0, %c0_i32, %arg1 : i32, i32, i32
  }
  func.func @transform_1(%arg0: i32, %arg1: i32) -> (i32, i32) {
    %c0_i32 = arith.constant 0 : i32
    %c0_i32_0 = arith.constant 0 : i32
    %c0_i32_1 = arith.constant 0 : i32
    return %c0_i32, %c0_i32_0 : i32, i32
  }
  func.func @transform_2(%arg0: i32, %arg1: i32) -> (i32, i32) {
    %c0_i32 = arith.constant 0 : i32
    %c0_i32_0 = arith.constant 0 : i32
    %c0_i32_1 = arith.constant 0 : i32
    return %c0_i32, %c0_i32_0 : i32, i32
  }
  func.func @transform_3(%arg0: i32, %arg1: i32) -> (i32, i32, i32) {
    %c0_i32 = arith.constant 0 : i32
    %c0_i32_0 = arith.constant 0 : i32
    return %arg0, %c0_i32, %arg1 : i32, i32, i32
  }
}

module attributes {stable_mosaic.version = 11 : i64} {
  func.func @_conv1x1_kernel(%arg0: i32, %arg1: i32, %arg2: memref<1x32x64xf32, #tpu.memory_space<vmem>>, %arg3: memref<8x32xf32, #tpu.memory_space<vmem>>, %arg4: memref<8x1xf32, #tpu.memory_space<vmem>>, %arg5: memref<1x8x64xf32, #tpu.memory_space<vmem>>) attributes {dimension_semantics = [#tpu.dimension_semantics<parallel>, #tpu.dimension_semantics<parallel>], iteration_bounds = array<i64: 2, 1>, scalar_prefetch = 0 : i64, scratch_operands = 0 : i64, tpu.core_type = #tpu.core_type<tc>, window_params = [{transform_indices = @transform_0, window_bounds = array<i64: 1, 32, 64>}, {pipeline_mode = #tpu.pipeline_mode<synchronous>, transform_indices = @transform_1, window_bounds = array<i64: 8, 32>}, {pipeline_mode = #tpu.pipeline_mode<synchronous>, transform_indices = @transform_2, window_bounds = array<i64: 8, 1>}, {transform_indices = @transform_3, window_bounds = array<i64: 1, 8, 64>}]} {
    %c0 = arith.constant 0 : index
    %c0_0 = arith.constant 0 : index
    %c0_1 = arith.constant 0 : index
    %0 = vector.load %arg2[%c0, %c0_0, %c0_1] : memref<1x32x64xf32, #tpu.memory_space<vmem>>, vector<1x32x64xf32>
    %1 = vector.shape_cast %0 : vector<1x32x64xf32> to vector<32x64xf32>
    %c0_2 = arith.constant 0 : index
    %c0_3 = arith.constant 0 : index
    %2 = vector.load %arg3[%c0_2, %c0_3] : memref<8x32xf32, #tpu.memory_space<vmem>>, vector<8x32xf32>
    %cst = arith.constant dense<0.000000e+00> : vector<8x64xf32>
    %3 = tpu.matmul %2, %1, %cst {dimension_numbers = #tpu.dot_dimension_numbers<[1], [0], [0], [1], [0, 0, 1, 1], [], []>} : vector<8x32xf32>, vector<32x64xf32>, vector<8x64xf32> -> vector<8x64xf32>
    %c0_4 = arith.constant 0 : index
    %c0_5 = arith.constant 0 : index
    %4 = vector.load %arg4[%c0_4, %c0_5] : memref<8x1xf32, #tpu.memory_space<vmem>>, vector<8x1xf32>
    %5 = vector.broadcast %4 : vector<8x1xf32> to vector<8x64xf32>
    %6 = arith.addf %3, %5 : vector<8x64xf32>
    %c0_6 = arith.constant 0 : index
    %c0_7 = arith.constant 0 : index
    %c0_8 = arith.constant 0 : index
    %7 = vector.load %arg5[%c0_6, %c0_7, %c0_8] : memref<1x8x64xf32, #tpu.memory_space<vmem>>, vector<1x8x64xf32>
    %8 = vector.shape_cast %7 : vector<1x8x64xf32> to vector<8x64xf32>
    %9 = vector.shape_cast %6 : vector<8x64xf32> to vector<1x8x64xf32>
    tpu.vector_store %arg5[%c0_6, %c0_7, %c0_8], %9 {strides = array<i32>} : memref<1x8x64xf32, #tpu.memory_space<vmem>>, vector<1x8x64xf32>,
    return
  }
  func.func @transform_0(%arg0: i32, %arg1: i32) -> (i32, i32, i32) {
    %c0_i32 = arith.constant 0 : i32
    %c0_i32_0 = arith.constant 0 : i32
    return %arg0, %c0_i32, %arg1 : i32, i32, i32
  }
  func.func @transform_1(%arg0: i32, %arg1: i32) -> (i32, i32) {
    %c0_i32 = arith.constant 0 : i32
    %c0_i32_0 = arith.constant 0 : i32
    %c0_i32_1 = arith.constant 0 : i32
    return %c0_i32, %c0_i32_0 : i32, i32
  }
  func.func @transform_2(%arg0: i32, %arg1: i32) -> (i32, i32) {
    %c0_i32 = arith.constant 0 : i32
    %c0_i32_0 = arith.constant 0 : i32
    %c0_i32_1 = arith.constant 0 : i32
    return %c0_i32, %c0_i32_0 : i32, i32
  }
  func.func @transform_3(%arg0: i32, %arg1: i32) -> (i32, i32, i32) {
    %c0_i32 = arith.constant 0 : i32
    %c0_i32_0 = arith.constant 0 : i32
    return %arg0, %c0_i32, %arg1 : i32, i32, i32
  }
}

module attributes {stable_mosaic.version = 11 : i64} {
  func.func @_conv1x1_kernel(%arg0: i32, %arg1: i32, %arg2: memref<1x32x16xf32, #tpu.memory_space<vmem>>, %arg3: memref<8x32xf32, #tpu.memory_space<vmem>>, %arg4: memref<8x1xf32, #tpu.memory_space<vmem>>, %arg5: memref<1x8x16xf32, #tpu.memory_space<vmem>>) attributes {dimension_semantics = [#tpu.dimension_semantics<parallel>, #tpu.dimension_semantics<parallel>], iteration_bounds = array<i64: 2, 1>, scalar_prefetch = 0 : i64, scratch_operands = 0 : i64, tpu.core_type = #tpu.core_type<tc>, window_params = [{transform_indices = @transform_0, window_bounds = array<i64: 1, 32, 16>}, {pipeline_mode = #tpu.pipeline_mode<synchronous>, transform_indices = @transform_1, window_bounds = array<i64: 8, 32>}, {pipeline_mode = #tpu.pipeline_mode<synchronous>, transform_indices = @transform_2, window_bounds = array<i64: 8, 1>}, {transform_indices = @transform_3, window_bounds = array<i64: 1, 8, 16>}]} {
    %c0 = arith.constant 0 : index
    %c0_0 = arith.constant 0 : index
    %c0_1 = arith.constant 0 : index
    %0 = vector.load %arg2[%c0, %c0_0, %c0_1] : memref<1x32x16xf32, #tpu.memory_space<vmem>>, vector<1x32x16xf32>
    %1 = vector.shape_cast %0 : vector<1x32x16xf32> to vector<32x16xf32>
    %c0_2 = arith.constant 0 : index
    %c0_3 = arith.constant 0 : index
    %2 = vector.load %arg3[%c0_2, %c0_3] : memref<8x32xf32, #tpu.memory_space<vmem>>, vector<8x32xf32>
    %cst = arith.constant dense<0.000000e+00> : vector<8x16xf32>
    %3 = tpu.matmul %2, %1, %cst {dimension_numbers = #tpu.dot_dimension_numbers<[1], [0], [0], [1], [0, 0, 1, 1], [], []>} : vector<8x32xf32>, vector<32x16xf32>, vector<8x16xf32> -> vector<8x16xf32>
    %c0_4 = arith.constant 0 : index
    %c0_5 = arith.constant 0 : index
    %4 = vector.load %arg4[%c0_4, %c0_5] : memref<8x1xf32, #tpu.memory_space<vmem>>, vector<8x1xf32>
    %5 = vector.broadcast %4 : vector<8x1xf32> to vector<8x16xf32>
    %6 = arith.addf %3, %5 : vector<8x16xf32>
    %c0_6 = arith.constant 0 : index
    %c0_7 = arith.constant 0 : index
    %c0_8 = arith.constant 0 : index
    %7 = vector.load %arg5[%c0_6, %c0_7, %c0_8] : memref<1x8x16xf32, #tpu.memory_space<vmem>>, vector<1x8x16xf32>
    %8 = vector.shape_cast %7 : vector<1x8x16xf32> to vector<8x16xf32>
    %9 = vector.shape_cast %6 : vector<8x16xf32> to vector<1x8x16xf32>
    tpu.vector_store %arg5[%c0_6, %c0_7, %c0_8], %9 {strides = array<i32>} : memref<1x8x16xf32, #tpu.memory_space<vmem>>, vector<1x8x16xf32>,
    return
  }
  func.func @transform_0(%arg0: i32, %arg1: i32) -> (i32, i32, i32) {
    %c0_i32 = arith.constant 0 : i32
    %c0_i32_0 = arith.constant 0 : i32
    return %arg0, %c0_i32, %arg1 : i32, i32, i32
  }
  func.func @transform_1(%arg0: i32, %arg1: i32) -> (i32, i32) {
    %c0_i32 = arith.constant 0 : i32
    %c0_i32_0 = arith.constant 0 : i32
    %c0_i32_1 = arith.constant 0 : i32
    return %c0_i32, %c0_i32_0 : i32, i32
  }
  func.func @transform_2(%arg0: i32, %arg1: i32) -> (i32, i32) {
    %c0_i32 = arith.constant 0 : i32
    %c0_i32_0 = arith.constant 0 : i32
    %c0_i32_1 = arith.constant 0 : i32
    return %c0_i32, %c0_i32_0 : i32, i32
  }
  func.func @transform_3(%arg0: i32, %arg1: i32) -> (i32, i32, i32) {
    %c0_i32 = arith.constant 0 : i32
    %c0_i32_0 = arith.constant 0 : i32
    return %arg0, %c0_i32, %arg1 : i32, i32, i32
  }
}

module attributes {stable_mosaic.version = 11 : i64} {
  func.func @_conv1x1_kernel(%arg0: i32, %arg1: i32, %arg2: memref<1x32x4xf32, #tpu.memory_space<vmem>>, %arg3: memref<8x32xf32, #tpu.memory_space<vmem>>, %arg4: memref<8x1xf32, #tpu.memory_space<vmem>>, %arg5: memref<1x8x4xf32, #tpu.memory_space<vmem>>) attributes {dimension_semantics = [#tpu.dimension_semantics<parallel>, #tpu.dimension_semantics<parallel>], iteration_bounds = array<i64: 2, 1>, scalar_prefetch = 0 : i64, scratch_operands = 0 : i64, tpu.core_type = #tpu.core_type<tc>, window_params = [{transform_indices = @transform_0, window_bounds = array<i64: 1, 32, 4>}, {pipeline_mode = #tpu.pipeline_mode<synchronous>, transform_indices = @transform_1, window_bounds = array<i64: 8, 32>}, {pipeline_mode = #tpu.pipeline_mode<synchronous>, transform_indices = @transform_2, window_bounds = array<i64: 8, 1>}, {transform_indices = @transform_3, window_bounds = array<i64: 1, 8, 4>}]} {
    %c0 = arith.constant 0 : index
    %c0_0 = arith.constant 0 : index
    %c0_1 = arith.constant 0 : index
    %0 = vector.load %arg2[%c0, %c0_0, %c0_1] : memref<1x32x4xf32, #tpu.memory_space<vmem>>, vector<1x32x4xf32>
    %1 = vector.shape_cast %0 : vector<1x32x4xf32> to vector<32x4xf32>
    %c0_2 = arith.constant 0 : index
    %c0_3 = arith.constant 0 : index
    %2 = vector.load %arg3[%c0_2, %c0_3] : memref<8x32xf32, #tpu.memory_space<vmem>>, vector<8x32xf32>
    %cst = arith.constant dense<0.000000e+00> : vector<8x4xf32>
    %3 = tpu.matmul %2, %1, %cst {dimension_numbers = #tpu.dot_dimension_numbers<[1], [0], [0], [1], [0, 0, 1, 1], [], []>} : vector<8x32xf32>, vector<32x4xf32>, vector<8x4xf32> -> vector<8x4xf32>
    %c0_4 = arith.constant 0 : index
    %c0_5 = arith.constant 0 : index
    %4 = vector.load %arg4[%c0_4, %c0_5] : memref<8x1xf32, #tpu.memory_space<vmem>>, vector<8x1xf32>
    %5 = vector.broadcast %4 : vector<8x1xf32> to vector<8x4xf32>
    %6 = arith.addf %3, %5 : vector<8x4xf32>
    %c0_6 = arith.constant 0 : index
    %c0_7 = arith.constant 0 : index
    %c0_8 = arith.constant 0 : index
    %7 = vector.load %arg5[%c0_6, %c0_7, %c0_8] : memref<1x8x4xf32, #tpu.memory_space<vmem>>, vector<1x8x4xf32>
    %8 = vector.shape_cast %7 : vector<1x8x4xf32> to vector<8x4xf32>
    %9 = vector.shape_cast %6 : vector<8x4xf32> to vector<1x8x4xf32>
    tpu.vector_store %arg5[%c0_6, %c0_7, %c0_8], %9 {strides = array<i32>} : memref<1x8x4xf32, #tpu.memory_space<vmem>>, vector<1x8x4xf32>,
    return
  }
  func.func @transform_0(%arg0: i32, %arg1: i32) -> (i32, i32, i32) {
    %c0_i32 = arith.constant 0 : i32
    %c0_i32_0 = arith.constant 0 : i32
    return %arg0, %c0_i32, %arg1 : i32, i32, i32
  }
  func.func @transform_1(%arg0: i32, %arg1: i32) -> (i32, i32) {
    %c0_i32 = arith.constant 0 : i32
    %c0_i32_0 = arith.constant 0 : i32
    %c0_i32_1 = arith.constant 0 : i32
    return %c0_i32, %c0_i32_0 : i32, i32
  }
  func.func @transform_2(%arg0: i32, %arg1: i32) -> (i32, i32) {
    %c0_i32 = arith.constant 0 : i32
    %c0_i32_0 = arith.constant 0 : i32
    %c0_i32_1 = arith.constant 0 : i32
    return %c0_i32, %c0_i32_0 : i32, i32
  }
  func.func @transform_3(%arg0: i32, %arg1: i32) -> (i32, i32, i32) {
    %c0_i32 = arith.constant 0 : i32
    %c0_i32_0 = arith.constant 0 : i32
    return %arg0, %c0_i32, %arg1 : i32, i32, i32
  }
}

</mosaic_0001>

<llo_original>
// kernel: injector_net_forward.5
$region0: #{injector_net_forward.5}
  #allocation0 [shape = 'u32[]', space=smem, size = 0x4, offset = 0x4, fixed_abs, tag = 'smem constant byte address 0x4 - core index']
  #allocation1 [shape = 'u32[144,128]{1,0:T(1,128)}', space=vmem, size = 0x12000, scoped, tag = 'internal scratch']
  %s0 = inlined_call_operand.vmem [shape: f32[2,4,256], index: 0, kind: input, shape index: {}]
  %s1 = inlined_call_operand.vmem [shape: f32[32,4], index: 1, kind: input, shape index: {}]
  %s2 = inlined_call_operand.vmem [shape: f32[32,1], index: 2, kind: input, shape index: {}]
  %s3 = inlined_call_operand.vmem [shape: f32[2,32,256], index: 3, kind: output, shape index: {}]
  %s4 = sld [smem:[#allocation0]]
  $region45: #{injector_net_forward.5} parent=0
    _
  %s6 = ssub.s32 1, %s4
  %s7 = scalar_select 0, %s6, %s4
  loop: start=0, step=1, limit=4
  $region2: #{injector_net_forward.5} parent=0 // loop_pre_header
    _
  $region3: #{injector_net_forward.5} parent=0 // loop_header
    %s9 = sphi 0, %s13
    %p10 = scmp.ge.s32.totalorder %s9, 4
    %s16 = sphi 0, %s28
    %s17 = sphi 0, %s24
    %s18 = sphi 0, %s16
    %s19 = sphi 0, %s17
    %s20 = sphi 0, %s18
    %s21 = sphi 0, %s19
    %s33 = sphi 0, %s35
    %s36 = sphi 0, %s33
    %s37 = sphi 0, %s36
    %s53 = sphi 0, %s37
    %s57 = sphi 0, %s57
    %s59 = sphi 0, %s57
    %s60 = sphi 0, %s59
    %s74 = sphi 0, %s60
    %s78 = sphi 0, %s78
    %s80 = sphi 0, %s78
    %s81 = sphi 0, %s80
    %s95 = sphi 0, %s81
    %s103 = sphi 0, %s105
    %s106 = sphi 0, %s103
    %s107 = sphi 0, %s106
    %s123 = sphi 0, %s107
  $region4: #{injector_net_forward.5} parent=0 // loop_header_branch
    %12 = sbr.rel (%p10) target = $region8
  $region5: #{injector_net_forward.5} parent=0 // loop_body
    %s14 = ssub.s32 %s9, 1
    %s15 = ssub.s32 %s9, 2
    %s22 = sadd.s32 1, %s17
    %p23 = scmp.ge.s32.totalorder %s22, 1
    %s24 = scalar_select %p23, 0, %s22
    %s25 = sadd.s32 1, %s16
    %s26 = scalar_select %p23, %s25, %s16
    %p27 = scmp.ge.s32.totalorder %s26, 2
    %s28 = scalar_select %p27, 0, %s26
    %s29 = ssub.s32 %s16, %s28
    %s30 = ssub.s32 %s17, %s24
    %s31 = sor.u32 %s29, %s30
    %p32 = scmp.eq.s32.totalorder %s31, 0
    %s34 = sadd.s32 %s33, 1
    %s35 = scalar_select %p32, %s33, %s34
    %p38 = pneg %p32
    %p39 = scmp.eq.s32.totalorder %s9, 1
    %p40 = por %p38, %p39
    %p41 = scmp.ne.s32.totalorder %s33, %s36
    %p42 = scmp.eq.s32.totalorder %s9, 0
    %p43 = por %p41, %p42
    %p44 = scmp.ne.s32.totalorder %s33, %s36
    %p45 = scmp.eq.s32.totalorder %s14, 1
    %p46 = por %p44, %p45
    %p47 = scmp.ne.s32.totalorder %s36, %s37
    %p48 = scmp.eq.s32.totalorder %s14, 0
    %p49 = por %p47, %p48
    %p50 = scmp.ne.s32.totalorder %s36, %s37
    %p51 = scmp.eq.s32.totalorder %s15, 1
    %p52 = por %p50, %p51
    %p54 = scmp.ne.s32.totalorder %s37, %s53
    %p55 = scmp.eq.s32.totalorder %s15, 0
    %p56 = por %p54, %p55
    %s58 = sadd.s32 %s57, 1
    %p61 = scmp.eq.s32.totalorder %s9, 1
    %p62 = scmp.ne.s32.totalorder %s57, %s59
    %p63 = scmp.eq.s32.totalorder %s9, 0
    %p64 = por %p62, %p63
    %p65 = scmp.ne.s32.totalorder %s57, %s59
    %p66 = scmp.eq.s32.totalorder %s14, 1
    %p67 = por %p65, %p66
    %p68 = scmp.ne.s32.totalorder %s59, %s60
    %p69 = scmp.eq.s32.totalorder %s14, 0
    %p70 = por %p68, %p69
    %p71 = scmp.ne.s32.totalorder %s59, %s60
    %p72 = scmp.eq.s32.totalorder %s15, 1
    %p73 = por %p71, %p72
    %p75 = scmp.ne.s32.totalorder %s60, %s74
    %p76 = scmp.eq.s32.totalorder %s15, 0
    %p77 = por %p75, %p76
    %s79 = sadd.s32 %s78, 1
    %p82 = scmp.eq.s32.totalorder %s9, 1
    %p83 = scmp.ne.s32.totalorder %s78, %s80
    %p84 = scmp.eq.s32.totalorder %s9, 0
    %p85 = por %p83, %p84
    %p86 = scmp.ne.s32.totalorder %s78, %s80
    %p87 = scmp.eq.s32.totalorder %s14, 1
    %p88 = por %p86, %p87
    %p89 = scmp.ne.s32.totalorder %s80, %s81
    %p90 = scmp.eq.s32.totalorder %s14, 0
    %p91 = por %p89, %p90
    %p92 = scmp.ne.s32.totalorder %s80, %s81
    %p93 = scmp.eq.s32.totalorder %s15, 1
    %p94 = por %p92, %p93
    %p96 = scmp.ne.s32.totalorder %s81, %s95
    %p97 = scmp.eq.s32.totalorder %s15, 0
    %p98 = por %p96, %p97
    %s99 = ssub.s32 %s16, %s28
    %s100 = ssub.s32 %s17, %s24
    %s101 = sor.u32 %s99, %s100
    %p102 = scmp.eq.s32.totalorder %s101, 0
    %s104 = sadd.s32 %s103, 1
    %s105 = scalar_select %p102, %s103, %s104
    %p108 = pneg %p102
    %p109 = scmp.eq.s32.totalorder %s9, 1
    %p110 = por %p108, %p109
    %p111 = scmp.ne.s32.totalorder %s103, %s106
    %p112 = scmp.eq.s32.totalorder %s9, 0
    %p113 = por %p111, %p112
    %p114 = scmp.ne.s32.totalorder %s103, %s106
    %p115 = scmp.eq.s32.totalorder %s14, 1
    %p116 = por %p114, %p115
    %p117 = scmp.ne.s32.totalorder %s106, %s107
    %p118 = scmp.eq.s32.totalorder %s14, 0
    %p119 = por %p117, %p118
    %p120 = scmp.ne.s32.totalorder %s106, %s107
    %p121 = scmp.eq.s32.totalorder %s15, 1
    %p122 = por %p120, %p121
    %p124 = scmp.ne.s32.totalorder %s107, %s123
    %p125 = scmp.eq.s32.totalorder %s15, 0
    %p126 = por %p124, %p125
    %p127 = scmp.le.s32.totalorder 1, %s9
    %p128 = scmp.lt.s32.totalorder %s9, 3
    %p129 = pnand %p127, %p128
    %p130 = pneg %p129
    // Predicated region
    $region9: #{injector_net_forward.5} parent=5 // pred_check
      _
    $region10: #{injector_net_forward.5} parent=5 // pred_check_branch
      %132 = sbr.rel (%p129) target = $region12
    $region11: #{injector_net_forward.5} parent=5 // pred_region
      %s133 = ssub.s32 %s9, 1
      // Predicated region
      $region13: #{injector_net_forward.5} parent=11 // pred_check
        %p134 = pneg %p70
      $region14: #{injector_net_forward.5} parent=11 // pred_check_branch
        %136 = sbr.rel (%p134) target = $region16
      $region15: #{injector_net_forward.5} parent=11 // pred_region
        _
      $region16: #{injector_net_forward.5} parent=11 // pred_fallthru
        _
      // Predicated region
      $region17: #{injector_net_forward.5} parent=11 // pred_check
        %p137 = pneg %p91
      $region18: #{injector_net_forward.5} parent=11 // pred_check_branch
        %139 = sbr.rel (%p137) target = $region20
      $region19: #{injector_net_forward.5} parent=11 // pred_region
        _
      $region20: #{injector_net_forward.5} parent=11 // pred_fallthru
        _
    $region12: #{injector_net_forward.5} parent=5 // pred_fallthru
      _
    %p140 = scmp.lt.s32.totalorder %s9, 2
    // Predicated region
    $region21: #{injector_net_forward.5} parent=5 // pred_check
      %p141 = pneg %p140
    $region22: #{injector_net_forward.5} parent=5 // pred_check_branch
      %143 = sbr.rel (%p141) target = $region24
    $region23: #{injector_net_forward.5} parent=5 // pred_region
      // Predicated region
      $region25: #{injector_net_forward.5} parent=23 // pred_check
        %p144 = pneg %p43
      $region26: #{injector_net_forward.5} parent=23 // pred_check_branch
        %146 = sbr.rel (%p144) target = $region28
      $region27: #{injector_net_forward.5} parent=23 // pred_region
        %s147 = smul.u32 2, %s17
        %p148 = scmp.lt.s32.totalorder %s16, 1
        %s149 = scalar_select %p148, %s16, 1
        %p150 = scmp.lt.s32.totalorder %s147, 1
        %s151 = scalar_select %p150, %s147, 1
        %s152 = smul.addr %s149, 2
        %s153 = sadd.s32 %s151, %s152
        %s154 = smul.addr %s153, 4
        %s155 = scalar_lea.vmem %s0, %s154
        %s156 = smul.u32 2, %s17
      $region28: #{injector_net_forward.5} parent=23 // pred_fallthru
        _
    $region24: #{injector_net_forward.5} parent=5 // pred_fallthru
      _
    %p157 = scmp.le.s32.totalorder 1, %s9
    %p158 = scmp.lt.s32.totalorder %s9, 3
    %p159 = pnand %p157, %p158
    %p160 = pneg %p159
    // Predicated region
    $region29: #{injector_net_forward.5} parent=5 // pred_check
      _
    $region30: #{injector_net_forward.5} parent=5 // pred_check_branch
      %162 = sbr.rel (%p159) target = $region32
    $region31: #{injector_net_forward.5} parent=5 // pred_region
      %s163 = ssub.s32 %s9, 1
      %s164 = smul.u32 2, %s19
      %p165 = scmp.lt.s32.totalorder %s18, 1
      %s166 = scalar_select %p165, %s18, 1
      %p167 = scmp.lt.s32.totalorder %s164, 1
      %s168 = scalar_select %p167, %s164, 1
      %s169 = smul.addr %s166, 2
      %s170 = sadd.s32 %s168, %s169
      %s171 = smul.addr %s170, 4
      %s172 = scalar_lea.vmem %s0, %s171
      %p173 = pneg %p49
      %p174 = pneg %p46
      %p175 = pneg %p70
      %p176 = pneg %p67
      %p177 = pneg %p91
      %p178 = pneg %p88
      %p179 = pneg %p119
      %p180 = pneg %p116
      %s181 = smul.u32 2, %s19
      %p182 = scmp.lt.s32.totalorder %s18, 1
      %s183 = scalar_select %p182, %s18, 1
      %p184 = scmp.lt.s32.totalorder %s181, 1
      %s185 = scalar_select %p184, %s181, 1
      %s186 = smul.addr %s183, 8
      %s187 = sadd.s32 %s185, %s186
      %s188 = smul.addr %s187, 8
      %s189 = scalar_lea.vmem %s3, %s188
      %s190 = smul.u32 2, %s19
      %p191 = scmp.lt.s32.totalorder %s18, 1
      %s192 = scalar_select %p191, %s18, 1
      %p193 = scmp.lt.s32.totalorder %s190, 1
      %s194 = scalar_select %p193, %s190, 1
      %s195 = smul.addr %s192, 2
      %s196 = sadd.s32 %s194, %s195
      %s197 = smul.addr %s196, 4
      %s198 = scalar_lea.vmem %s0, %s197
      %s199 = smul.u32 2, %s19
      %s200 = smul.u32 2, %s19
      %p201 = scmp.lt.s32.totalorder %s18, 1
      %s202 = scalar_select %p201, %s18, 1
      %p203 = scmp.lt.s32.totalorder %s200, 1
      %s204 = scalar_select %p203, %s200, 1
      %s205 = smul.addr %s202, 8
      %s206 = sadd.s32 %s204, %s205
      %s207 = smul.addr %s206, 8
      %s208 = scalar_lea.vmem %s3, %s207
      %s209 = smul.u32 2, %s19
      %v210 = vld [vmem:[%s198] sm:$0xff]
      %v211 = vld [vmem:[%s1] sm:$0xff]
      %v212 = vld [vmem:[%s1 + $0x8] sm:$0xff]
      %v213 = vld [vmem:[%s1 + $0x10] sm:$0xff]
      %v214 = vld [vmem:[%s1 + $0x18] sm:$0xff]
      %v215 = vld [vmem:[%s2] sm:$0xff]
      %v216 = vld [vmem:[%s2 + $0x8] sm:$0xff]
      %v217 = vld [vmem:[%s2 + $0x10] sm:$0xff]
      %v218 = vld [vmem:[%s2 + $0x18] sm:$0xff]
      %220 = vset.pattern.permute.xlu0 0
      %221 = vperm.xlu0 %220, %v215
      %v222 = vpop.permute.xlu0 %221
      %225 = vset.pattern.permute.xlu0 0
      %226 = vperm.xlu0 %225, %v216
      %v227 = vpop.permute.xlu0 %226
      %230 = vset.pattern.permute.xlu0 0
      %231 = vperm.xlu0 %230, %v217
      %v232 = vpop.permute.xlu0 %231
      %235 = vset.pattern.permute.xlu0 0
      %236 = vperm.xlu0 %235, %v218
      %v237 = vpop.permute.xlu0 %236
      %v240 = vcombine.high %v210, %v210
      %vm241 = vcmask 31744
      %v243 = vsel %vm241, %v211, 0
      %v246 = vsel %vm241, %v212, 0
      %v249 = vsel %vm241, %v213, 0
      %v252 = vsel %vm241, %v214, 0
      %vm254 = vcmask 1043456
      %v255 = vsel %vm254, %v210, 0
      %v257 = vsel %vm254, %v240, 0
      %259 = vmatprep.subr.mxu0 %v257
      %260 = vmatpush1.msra.mxu0 %v255
      %261 = vmatprep.subr.mxu0 0.0
      %262 = vmatpush1.msra.mxu0 0.0
      %263 = vmatprep.subr.mxu0 0.0
      %264 = vmatpush1.msra.mxu0 0.0
      %265 = vmatprep.subr.mxu0 0.0
      %266 = vmatpush1.msra.mxu0 0.0
      %267 = vmatprep.subr.mxu0 0.0
      %268 = vmatpush1.msra.mxu0 0.0
      %269 = vmatprep.subr.mxu0 0.0
      %270 = vmatpush1.msra.mxu0 0.0
      %271 = vmatprep.subr.mxu0 0.0
      %272 = vmatpush1.msra.mxu0 0.0
      %273 = vmatprep.subr.mxu0 0.0
      %274 = vmatpush1.msra.mxu0 0.0
      %275 = vmatprep.subr.mxu0 0.0
      %276 = vmatpush1.msra.mxu0 0.0
      %277 = vmatprep.subr.mxu0 0.0
      %278 = vmatpush1.msra.mxu0 0.0
      %279 = vmatprep.subr.mxu0 0.0
      %280 = vmatpush1.msra.mxu0 0.0
      %281 = vmatprep.subr.mxu0 0.0
      %282 = vmatpush1.msra.mxu0 0.0
      %283 = vmatprep.subr.mxu0 0.0
      %284 = vmatpush1.msra.mxu0 0.0
      %285 = vmatprep.subr.mxu0 0.0
      %286 = vmatpush1.msra.mxu0 0.0
      %287 = vmatprep.subr.mxu0 0.0
      %288 = vmatpush1.msra.mxu0 0.0
      %289 = vmatprep.subr.mxu0 0.0
      %290 = vmatpush1.msra.mxu0 0.0
      %291 = vmatprep.subr.mxu0 0.0
      %292 = vmatpush1.msra.mxu0 0.0
      %293 = vmatprep.subr.mxu0 0.0
      %294 = vmatpush1.msra.mxu0 0.0
      %295 = vmatprep.subr.mxu0 0.0
      %296 = vmatpush1.msra.mxu0 0.0
      %297 = vmatprep.subr.mxu0 0.0
      %298 = vmatpush1.msra.mxu0 0.0
      %299 = vmatprep.subr.mxu0 0.0
      %300 = vmatpush1.msra.mxu0 0.0
      %301 = vmatprep.subr.mxu0 0.0
      %302 = vmatpush1.msra.mxu0 0.0
      %303 = vmatprep.subr.mxu0 0.0
      %304 = vmatpush1.msra.mxu0 0.0
      %305 = vmatprep.subr.mxu0 0.0
      %306 = vmatpush1.msra.mxu0 0.0
      %307 = vmatprep.subr.mxu0 0.0
      %308 = vmatpush1.msra.mxu0 0.0
      %309 = vmatprep.subr.mxu0 0.0
      %310 = vmatpush1.msra.mxu0 0.0
      %311 = vmatprep.subr.mxu0 0.0
      %312 = vmatpush1.msra.mxu0 0.0
      %313 = vmatprep.subr.mxu0 0.0
      %314 = vmatpush1.msra.mxu0 0.0
      %315 = vmatprep.subr.mxu0 0.0
      %316 = vmatpush1.msra.mxu0 0.0
      %317 = vmatprep.subr.mxu0 0.0
      %318 = vmatpush1.msra.mxu0 0.0
      %319 = vmatprep.subr.mxu0 0.0
      %320 = vmatpush1.msra.mxu0 0.0
      %321 = vmatprep.subr.mxu0 0.0
      %322 = vmatpush1.msra.mxu0 0.0
      %323 = vmatprep.mubr.f32.mxu0 0.0
      %324 = vmatmul.mubr.f32.gmra.mrb[0].mxu0 %v243
      %v325 = vpop.f32.mrb[0].mxu0
      %v326 = vadd.f32 %v222, %v325
      %v327 = vpop.f32.mrb[0].mxu0
      %v328 = vadd.f32 %v222, %v327
      %329 = vmatprep.mubr.f32.mxu0 0.0
      %330 = vmatmul.mubr.f32.gmra.mrb[0].mxu0 %v246
      %v331 = vpop.f32.mrb[0].mxu0
      %v332 = vadd.f32 %v227, %v331
      %v333 = vpop.f32.mrb[0].mxu0
      %v334 = vadd.f32 %v227, %v333
      %335 = vmatprep.mubr.f32.mxu0 0.0
      %336 = vmatmul.mubr.f32.gmra.mrb[0].mxu0 %v249
      %v337 = vpop.f32.mrb[0].mxu0
      %v338 = vadd.f32 %v232, %v337
      %v339 = vpop.f32.mrb[0].mxu0
      %v340 = vadd.f32 %v232, %v339
      %341 = vmatprep.mubr.f32.mxu0 0.0
      %342 = vmatmul.mubr.f32.gmra.mrb[0].mxu0 %v252
      %v343 = vpop.f32.mrb[0].mxu0
      %v344 = vadd.f32 %v237, %v343
      %v345 = vpop.f32.mrb[0].mxu0
      %v346 = vadd.f32 %v237, %v345
      %347 = vdwg.mxu0
      %348 = vst [vmem:[%s208] sm:$0xff] %v326
      %349 = vst [vmem:[%s208 + $0x8] sm:$0xff] %v328
      %350 = vst [vmem:[%s208 + $0x10] sm:$0xff] %v332
      %351 = vst [vmem:[%s208 + $0x18] sm:$0xff] %v334
      %352 = vst [vmem:[%s208 + $0x20] sm:$0xff] %v338
      %353 = vst [vmem:[%s208 + $0x28] sm:$0xff] %v340
      %354 = vst [vmem:[%s208 + $0x30] sm:$0xff] %v344
      %355 = vst [vmem:[%s208 + $0x38] sm:$0xff] %v346
      %s356 = smul.u32 2, %s19
      %p357 = scmp.lt.s32.totalorder %s18, 1
      %s358 = scalar_select %p357, %s18, 1
      %p359 = scmp.lt.s32.totalorder %s356, 1
      %s360 = scalar_select %p359, %s356, 1
      %s361 = smul.addr %s358, 8
      %s362 = sadd.s32 %s360, %s361
      %s363 = smul.addr %s362, 8
      %s364 = scalar_lea.vmem %s3, %s363
      // Predicated region
      $region33: #{injector_net_forward.5} parent=31 // pred_check
        %p365 = pneg %p116
      $region34: #{injector_net_forward.5} parent=31 // pred_check_branch
        %367 = sbr.rel (%p365) target = $region36
      $region35: #{injector_net_forward.5} parent=31 // pred_region
        %s368 = smul.u32 2, %s19
      $region36: #{injector_net_forward.5} parent=31 // pred_fallthru
        _
    $region32: #{injector_net_forward.5} parent=5 // pred_fallthru
      _
    %p369 = scmp.le.s32.totalorder 2, %s9
    // Predicated region
    $region37: #{injector_net_forward.5} parent=5 // pred_check
      %p370 = pneg %p369
    $region38: #{injector_net_forward.5} parent=5 // pred_check_branch
      %372 = sbr.rel (%p370) target = $region40
    $region39: #{injector_net_forward.5} parent=5 // pred_region
      %s373 = ssub.s32 %s9, 2
      // Predicated region
      $region41: #{injector_net_forward.5} parent=39 // pred_check
        %p374 = pneg %p122
      $region42: #{injector_net_forward.5} parent=39 // pred_check_branch
        %376 = sbr.rel (%p374) target = $region44
      $region43: #{injector_net_forward.5} parent=39 // pred_region
        %s377 = smul.u32 2, %s21
        %p378 = scmp.lt.s32.totalorder %s20, 1
        %s379 = scalar_select %p378, %s20, 1
        %p380 = scmp.lt.s32.totalorder %s377, 1
        %s381 = scalar_select %p380, %s377, 1
        %s382 = smul.addr %s379, 8
        %s383 = sadd.s32 %s381, %s382
        %s384 = smul.addr %s383, 8
        %s385 = scalar_lea.vmem %s3, %s384
      $region44: #{injector_net_forward.5} parent=39 // pred_fallthru
        _
    $region40: #{injector_net_forward.5} parent=5 // pred_fallthru
      _
  $region6: #{injector_net_forward.5} parent=0 // loop_footer
    %s13 = sadd.s32 1, %s9
  $region7: #{injector_net_forward.5} parent=0 // loop_footer_branch
    %8 = sbr.rel target = $region3
  $region8: #{injector_net_forward.5} parent=0 // loop_exit
    _

// kernel: injector_net_forward.6
$region0: #{injector_net_forward.6}
  #allocation0 [shape = 'u32[]', space=smem, size = 0x4, offset = 0x4, fixed_abs, tag = 'smem constant byte address 0x4 - core index']
  #allocation1 [shape = 'u32[144,128]{1,0:T(1,128)}', space=vmem, size = 0x12000, scoped, tag = 'internal scratch']
  %s0 = inlined_call_operand.vmem [shape: f32[2,32,256], index: 0, kind: input, shape index: {}]
  %s1 = inlined_call_operand.vmem [shape: f32[8,32], index: 1, kind: input, shape index: {}]
  %s2 = inlined_call_operand.vmem [shape: f32[8,1], index: 2, kind: input, shape index: {}]
  %s3 = inlined_call_operand.vmem [shape: f32[2,8,256], index: 3, kind: output, shape index: {}]
  %s4 = sld [smem:[#allocation0]]
  $region45: #{injector_net_forward.6} parent=0
    _
  %s6 = ssub.s32 1, %s4
  %s7 = scalar_select 0, %s6, %s4
  loop: start=0, step=1, limit=4
  $region2: #{injector_net_forward.6} parent=0 // loop_pre_header
    _
  $region3: #{injector_net_forward.6} parent=0 // loop_header
    %s9 = sphi 0, %s13
    %p10 = scmp.ge.s32.totalorder %s9, 4
    %s16 = sphi 0, %s28
    %s17 = sphi 0, %s24
    %s18 = sphi 0, %s16
    %s19 = sphi 0, %s17
    %s20 = sphi 0, %s18
    %s21 = sphi 0, %s19
    %s33 = sphi 0, %s35
    %s36 = sphi 0, %s33
    %s37 = sphi 0, %s36
    %s53 = sphi 0, %s37
    %s57 = sphi 0, %s57
    %s59 = sphi 0, %s57
    %s60 = sphi 0, %s59
    %s74 = sphi 0, %s60
    %s78 = sphi 0, %s78
    %s80 = sphi 0, %s78
    %s81 = sphi 0, %s80
    %s95 = sphi 0, %s81
    %s103 = sphi 0, %s105
    %s106 = sphi 0, %s103
    %s107 = sphi 0, %s106
    %s123 = sphi 0, %s107
  $region4: #{injector_net_forward.6} parent=0 // loop_header_branch
    %12 = sbr.rel (%p10) target = $region8
  $region5: #{injector_net_forward.6} parent=0 // loop_body
    %s14 = ssub.s32 %s9, 1
    %s15 = ssub.s32 %s9, 2
    %s22 = sadd.s32 1, %s17
    %p23 = scmp.ge.s32.totalorder %s22, 1
    %s24 = scalar_select %p23, 0, %s22
    %s25 = sadd.s32 1, %s16
    %s26 = scalar_select %p23, %s25, %s16
    %p27 = scmp.ge.s32.totalorder %s26, 2
    %s28 = scalar_select %p27, 0, %s26
    %s29 = ssub.s32 %s16, %s28
    %s30 = ssub.s32 %s17, %s24
    %s31 = sor.u32 %s29, %s30
    %p32 = scmp.eq.s32.totalorder %s31, 0
    %s34 = sadd.s32 %s33, 1
    %s35 = scalar_select %p32, %s33, %s34
    %p38 = pneg %p32
    %p39 = scmp.eq.s32.totalorder %s9, 1
    %p40 = por %p38, %p39
    %p41 = scmp.ne.s32.totalorder %s33, %s36
    %p42 = scmp.eq.s32.totalorder %s9, 0
    %p43 = por %p41, %p42
    %p44 = scmp.ne.s32.totalorder %s33, %s36
    %p45 = scmp.eq.s32.totalorder %s14, 1
    %p46 = por %p44, %p45
    %p47 = scmp.ne.s32.totalorder %s36, %s37
    %p48 = scmp.eq.s32.totalorder %s14, 0
    %p49 = por %p47, %p48
    %p50 = scmp.ne.s32.totalorder %s36, %s37
    %p51 = scmp.eq.s32.totalorder %s15, 1
    %p52 = por %p50, %p51
    %p54 = scmp.ne.s32.totalorder %s37, %s53
    %p55 = scmp.eq.s32.totalorder %s15, 0
    %p56 = por %p54, %p55
    %s58 = sadd.s32 %s57, 1
    %p61 = scmp.eq.s32.totalorder %s9, 1
    %p62 = scmp.ne.s32.totalorder %s57, %s59
    %p63 = scmp.eq.s32.totalorder %s9, 0
    %p64 = por %p62, %p63
    %p65 = scmp.ne.s32.totalorder %s57, %s59
    %p66 = scmp.eq.s32.totalorder %s14, 1
    %p67 = por %p65, %p66
    %p68 = scmp.ne.s32.totalorder %s59, %s60
    %p69 = scmp.eq.s32.totalorder %s14, 0
    %p70 = por %p68, %p69
    %p71 = scmp.ne.s32.totalorder %s59, %s60
    %p72 = scmp.eq.s32.totalorder %s15, 1
    %p73 = por %p71, %p72
    %p75 = scmp.ne.s32.totalorder %s60, %s74
    %p76 = scmp.eq.s32.totalorder %s15, 0
    %p77 = por %p75, %p76
    %s79 = sadd.s32 %s78, 1
    %p82 = scmp.eq.s32.totalorder %s9, 1
    %p83 = scmp.ne.s32.totalorder %s78, %s80
    %p84 = scmp.eq.s32.totalorder %s9, 0
    %p85 = por %p83, %p84
    %p86 = scmp.ne.s32.totalorder %s78, %s80
    %p87 = scmp.eq.s32.totalorder %s14, 1
    %p88 = por %p86, %p87
    %p89 = scmp.ne.s32.totalorder %s80, %s81
    %p90 = scmp.eq.s32.totalorder %s14, 0
    %p91 = por %p89, %p90
    %p92 = scmp.ne.s32.totalorder %s80, %s81
    %p93 = scmp.eq.s32.totalorder %s15, 1
    %p94 = por %p92, %p93
    %p96 = scmp.ne.s32.totalorder %s81, %s95
    %p97 = scmp.eq.s32.totalorder %s15, 0
    %p98 = por %p96, %p97
    %s99 = ssub.s32 %s16, %s28
    %s100 = ssub.s32 %s17, %s24
    %s101 = sor.u32 %s99, %s100
    %p102 = scmp.eq.s32.totalorder %s101, 0
    %s104 = sadd.s32 %s103, 1
    %s105 = scalar_select %p102, %s103, %s104
    %p108 = pneg %p102
    %p109 = scmp.eq.s32.totalorder %s9, 1
    %p110 = por %p108, %p109
    %p111 = scmp.ne.s32.totalorder %s103, %s106
    %p112 = scmp.eq.s32.totalorder %s9, 0
    %p113 = por %p111, %p112
    %p114 = scmp.ne.s32.totalorder %s103, %s106
    %p115 = scmp.eq.s32.totalorder %s14, 1
    %p116 = por %p114, %p115
    %p117 = scmp.ne.s32.totalorder %s106, %s107
    %p118 = scmp.eq.s32.totalorder %s14, 0
    %p119 = por %p117, %p118
    %p120 = scmp.ne.s32.totalorder %s106, %s107
    %p121 = scmp.eq.s32.totalorder %s15, 1
    %p122 = por %p120, %p121
    %p124 = scmp.ne.s32.totalorder %s107, %s123
    %p125 = scmp.eq.s32.totalorder %s15, 0
    %p126 = por %p124, %p125
    %p127 = scmp.le.s32.totalorder 1, %s9
    %p128 = scmp.lt.s32.totalorder %s9, 3
    %p129 = pnand %p127, %p128
    %p130 = pneg %p129
    // Predicated region
    $region9: #{injector_net_forward.6} parent=5 // pred_check
      _
    $region10: #{injector_net_forward.6} parent=5 // pred_check_branch
      %132 = sbr.rel (%p129) target = $region12
    $region11: #{injector_net_forward.6} parent=5 // pred_region
      %s133 = ssub.s32 %s9, 1
      // Predicated region
      $region13: #{injector_net_forward.6} parent=11 // pred_check
        %p134 = pneg %p70
      $region14: #{injector_net_forward.6} parent=11 // pred_check_branch
        %136 = sbr.rel (%p134) target = $region16
      $region15: #{injector_net_forward.6} parent=11 // pred_region
        _
      $region16: #{injector_net_forward.6} parent=11 // pred_fallthru
        _
      // Predicated region
      $region17: #{injector_net_forward.6} parent=11 // pred_check
        %p137 = pneg %p91
      $region18: #{injector_net_forward.6} parent=11 // pred_check_branch
        %139 = sbr.rel (%p137) target = $region20
      $region19: #{injector_net_forward.6} parent=11 // pred_region
        _
      $region20: #{injector_net_forward.6} parent=11 // pred_fallthru
        _
    $region12: #{injector_net_forward.6} parent=5 // pred_fallthru
      _
    %p140 = scmp.lt.s32.totalorder %s9, 2
    // Predicated region
    $region21: #{injector_net_forward.6} parent=5 // pred_check
      %p141 = pneg %p140
    $region22: #{injector_net_forward.6} parent=5 // pred_check_branch
      %143 = sbr.rel (%p141) target = $region24
    $region23: #{injector_net_forward.6} parent=5 // pred_region
      // Predicated region
      $region25: #{injector_net_forward.6} parent=23 // pred_check
        %p144 = pneg %p43
      $region26: #{injector_net_forward.6} parent=23 // pred_check_branch
        %146 = sbr.rel (%p144) target = $region28
      $region27: #{injector_net_forward.6} parent=23 // pred_region
        %s147 = smul.u32 2, %s17
        %p148 = scmp.lt.s32.totalorder %s16, 1
        %s149 = scalar_select %p148, %s16, 1
        %p150 = scmp.lt.s32.totalorder %s147, 1
        %s151 = scalar_select %p150, %s147, 1
        %s152 = smul.addr %s149, 8
        %s153 = sadd.s32 %s151, %s152
        %s154 = smul.addr %s153, 8
        %s155 = scalar_lea.vmem %s0, %s154
        %s156 = smul.u32 2, %s17
      $region28: #{injector_net_forward.6} parent=23 // pred_fallthru
        _
    $region24: #{injector_net_forward.6} parent=5 // pred_fallthru
      _
    %p157 = scmp.le.s32.totalorder 1, %s9
    %p158 = scmp.lt.s32.totalorder %s9, 3
    %p159 = pnand %p157, %p158
    %p160 = pneg %p159
    // Predicated region
    $region29: #{injector_net_forward.6} parent=5 // pred_check
      _
    $region30: #{injector_net_forward.6} parent=5 // pred_check_branch
      %162 = sbr.rel (%p159) target = $region32
    $region31: #{injector_net_forward.6} parent=5 // pred_region
      %s163 = ssub.s32 %s9, 1
      %s164 = smul.u32 2, %s19
      %p165 = scmp.lt.s32.totalorder %s18, 1
      %s166 = scalar_select %p165, %s18, 1
      %p167 = scmp.lt.s32.totalorder %s164, 1
      %s168 = scalar_select %p167, %s164, 1
      %s169 = smul.addr %s166, 8
      %s170 = sadd.s32 %s168, %s169
      %s171 = smul.addr %s170, 8
      %s172 = scalar_lea.vmem %s0, %s171
      %p173 = pneg %p49
      %p174 = pneg %p46
      %p175 = pneg %p70
      %p176 = pneg %p67
      %p177 = pneg %p91
      %p178 = pneg %p88
      %p179 = pneg %p119
      %p180 = pneg %p116
      %s181 = smul.u32 2, %s19
      %p182 = scmp.lt.s32.totalorder %s18, 1
      %s183 = scalar_select %p182, %s18, 1
      %p184 = scmp.lt.s32.totalorder %s181, 1
      %s185 = scalar_select %p184, %s181, 1
      %s186 = smul.addr %s183, 2
      %s187 = sadd.s32 %s185, %s186
      %s188 = smul.addr %s187, 8
      %s189 = scalar_lea.vmem %s3, %s188
      %s190 = smul.u32 2, %s19
      %p191 = scmp.lt.s32.totalorder %s18, 1
      %s192 = scalar_select %p191, %s18, 1
      %p193 = scmp.lt.s32.totalorder %s190, 1
      %s194 = scalar_select %p193, %s190, 1
      %s195 = smul.addr %s192, 8
      %s196 = sadd.s32 %s194, %s195
      %s197 = smul.addr %s196, 8
      %s198 = scalar_lea.vmem %s0, %s197
      %s199 = smul.u32 2, %s19
      %s200 = smul.u32 2, %s19
      %p201 = scmp.lt.s32.totalorder %s18, 1
      %s202 = scalar_select %p201, %s18, 1
      %p203 = scmp.lt.s32.totalorder %s200, 1
      %s204 = scalar_select %p203, %s200, 1
      %s205 = smul.addr %s202, 2
      %s206 = sadd.s32 %s204, %s205
      %s207 = smul.addr %s206, 8
      %s208 = scalar_lea.vmem %s3, %s207
      %s209 = smul.u32 2, %s19
      %v210 = vld [vmem:[%s198] sm:$0xff]
      %v211 = vld [vmem:[%s198 + $0x8] sm:$0xff]
      %v212 = vld [vmem:[%s198 + $0x10] sm:$0xff]
      %v213 = vld [vmem:[%s198 + $0x18] sm:$0xff]
      %v214 = vld [vmem:[%s198 + $0x20] sm:$0xff]
      %v215 = vld [vmem:[%s198 + $0x28] sm:$0xff]
      %v216 = vld [vmem:[%s198 + $0x30] sm:$0xff]
      %v217 = vld [vmem:[%s198 + $0x38] sm:$0xff]
      %v218 = vld [vmem:[%s1] sm:$0xff]
      %v219 = vld [vmem:[%s2] sm:$0xff]
      %221 = vset.pattern.permute.xlu0 0
      %222 = vperm.xlu0 %221, %v219
      %v223 = vpop.permute.xlu0 %222
      %vm225 = vcmask 261120
      %v227 = vsel %vm225, %v218, 0
      %229 = vmatprep.subr.mxu0 %v211
      %230 = vmatpush1.msra.mxu0 %v210
      %231 = vmatprep.subr.mxu0 %v213
      %232 = vmatpush1.msra.mxu0 %v212
      %233 = vmatprep.subr.mxu0 %v215
      %234 = vmatpush1.msra.mxu0 %v214
      %235 = vmatprep.subr.mxu0 %v217
      %236 = vmatpush1.msra.mxu0 %v216
      %237 = vmatprep.subr.mxu0 0.0
      %238 = vmatpush1.msra.mxu0 0.0
      %239 = vmatprep.subr.mxu0 0.0
      %240 = vmatpush1.msra.mxu0 0.0
      %241 = vmatprep.subr.mxu0 0.0
      %242 = vmatpush1.msra.mxu0 0.0
      %243 = vmatprep.subr.mxu0 0.0
      %244 = vmatpush1.msra.mxu0 0.0
      %245 = vmatprep.subr.mxu0 0.0
      %246 = vmatpush1.msra.mxu0 0.0
      %247 = vmatprep.subr.mxu0 0.0
      %248 = vmatpush1.msra.mxu0 0.0
      %249 = vmatprep.subr.mxu0 0.0
      %250 = vmatpush1.msra.mxu0 0.0
      %251 = vmatprep.subr.mxu0 0.0
      %252 = vmatpush1.msra.mxu0 0.0
      %253 = vmatprep.subr.mxu0 0.0
      %254 = vmatpush1.msra.mxu0 0.0
      %255 = vmatprep.subr.mxu0 0.0
      %256 = vmatpush1.msra.mxu0 0.0
      %257 = vmatprep.subr.mxu0 0.0
      %258 = vmatpush1.msra.mxu0 0.0
      %259 = vmatprep.subr.mxu0 0.0
      %260 = vmatpush1.msra.mxu0 0.0
      %261 = vmatprep.subr.mxu0 0.0
      %262 = vmatpush1.msra.mxu0 0.0
      %263 = vmatprep.subr.mxu0 0.0
      %264 = vmatpush1.msra.mxu0 0.0
      %265 = vmatprep.subr.mxu0 0.0
      %266 = vmatpush1.msra.mxu0 0.0
      %267 = vmatprep.subr.mxu0 0.0
      %268 = vmatpush1.msra.mxu0 0.0
      %269 = vmatprep.subr.mxu0 0.0
      %270 = vmatpush1.msra.mxu0 0.0
      %271 = vmatprep.subr.mxu0 0.0
      %272 = vmatpush1.msra.mxu0 0.0
      %273 = vmatprep.subr.mxu0 0.0
      %274 = vmatpush1.msra.mxu0 0.0
      %275 = vmatprep.subr.mxu0 0.0
      %276 = vmatpush1.msra.mxu0 0.0
      %277 = vmatprep.subr.mxu0 0.0
      %278 = vmatpush1.msra.mxu0 0.0
      %279 = vmatprep.subr.mxu0 0.0
      %280 = vmatpush1.msra.mxu0 0.0
      %281 = vmatprep.subr.mxu0 0.0
      %282 = vmatpush1.msra.mxu0 0.0
      %283 = vmatprep.subr.mxu0 0.0
      %284 = vmatpush1.msra.mxu0 0.0
      %285 = vmatprep.subr.mxu0 0.0
      %286 = vmatpush1.msra.mxu0 0.0
      %287 = vmatprep.subr.mxu0 0.0
      %288 = vmatpush1.msra.mxu0 0.0
      %289 = vmatprep.subr.mxu0 0.0
      %290 = vmatpush1.msra.mxu0 0.0
      %291 = vmatprep.subr.mxu0 0.0
      %292 = vmatpush1.msra.mxu0 0.0
      %293 = vmatprep.mubr.f32.mxu0 0.0
      %294 = vmatmul.mubr.f32.gmra.mrb[0].mxu0 %v227
      %v295 = vpop.f32.mrb[0].mxu0
      %v296 = vadd.f32 %v223, %v295
      %v297 = vpop.f32.mrb[0].mxu0
      %v298 = vadd.f32 %v223, %v297
      %299 = vdwg.mxu0
      %300 = vst [vmem:[%s208] sm:$0xff] %v296
      %301 = vst [vmem:[%s208 + $0x8] sm:$0xff] %v298
      %s302 = smul.u32 2, %s19
      %p303 = scmp.lt.s32.totalorder %s18, 1
      %s304 = scalar_select %p303, %s18, 1
      %p305 = scmp.lt.s32.totalorder %s302, 1
      %s306 = scalar_select %p305, %s302, 1
      %s307 = smul.addr %s304, 2
      %s308 = sadd.s32 %s306, %s307
      %s309 = smul.addr %s308, 8
      %s310 = scalar_lea.vmem %s3, %s309
      // Predicated region
      $region33: #{injector_net_forward.6} parent=31 // pred_check
        %p311 = pneg %p116
      $region34: #{injector_net_forward.6} parent=31 // pred_check_branch
        %313 = sbr.rel (%p311) target = $region36
      $region35: #{injector_net_forward.6} parent=31 // pred_region
        %s314 = smul.u32 2, %s19
      $region36: #{injector_net_forward.6} parent=31 // pred_fallthru
        _
    $region32: #{injector_net_forward.6} parent=5 // pred_fallthru
      _
    %p315 = scmp.le.s32.totalorder 2, %s9
    // Predicated region
    $region37: #{injector_net_forward.6} parent=5 // pred_check
      %p316 = pneg %p315
    $region38: #{injector_net_forward.6} parent=5 // pred_check_branch
      %318 = sbr.rel (%p316) target = $region40
    $region39: #{injector_net_forward.6} parent=5 // pred_region
      %s319 = ssub.s32 %s9, 2
      // Predicated region
      $region41: #{injector_net_forward.6} parent=39 // pred_check
        %p320 = pneg %p122
      $region42: #{injector_net_forward.6} parent=39 // pred_check_branch
        %322 = sbr.rel (%p320) target = $region44
      $region43: #{injector_net_forward.6} parent=39 // pred_region
        %s323 = smul.u32 2, %s21
        %p324 = scmp.lt.s32.totalorder %s20, 1
        %s325 = scalar_select %p324, %s20, 1
        %p326 = scmp.lt.s32.totalorder %s323, 1
        %s327 = scalar_select %p326, %s323, 1
        %s328 = smul.addr %s325, 2
        %s329 = sadd.s32 %s327, %s328
        %s330 = smul.addr %s329, 8
        %s331 = scalar_lea.vmem %s3, %s330
      $region44: #{injector_net_forward.6} parent=39 // pred_fallthru
        _
    $region40: #{injector_net_forward.6} parent=5 // pred_fallthru
      _
  $region6: #{injector_net_forward.6} parent=0 // loop_footer
    %s13 = sadd.s32 1, %s9
  $region7: #{injector_net_forward.6} parent=0 // loop_footer_branch
    %8 = sbr.rel target = $region3
  $region8: #{injector_net_forward.6} parent=0 // loop_exit
    _

// kernel: injector_net_forward.7
$region0: #{injector_net_forward.7}
  #allocation0 [shape = 'u32[]', space=smem, size = 0x4, offset = 0x4, fixed_abs, tag = 'smem constant byte address 0x4 - core index']
  #allocation1 [shape = 'u32[144,128]{1,0:T(1,128)}', space=vmem, size = 0x12000, scoped, tag = 'internal scratch']
  %s0 = inlined_call_operand.vmem [shape: f32[2,32,64], index: 0, kind: input, shape index: {}]
  %s1 = inlined_call_operand.vmem [shape: f32[8,32], index: 1, kind: input, shape index: {}]
  %s2 = inlined_call_operand.vmem [shape: f32[8,1], index: 2, kind: input, shape index: {}]
  %s3 = inlined_call_operand.vmem [shape: f32[2,8,64], index: 3, kind: output, shape index: {}]
  %s4 = sld [smem:[#allocation0]]
  $region45: #{injector_net_forward.7} parent=0
    _
  %s6 = ssub.s32 1, %s4
  %s7 = scalar_select 0, %s6, %s4
  loop: start=0, step=1, limit=4
  $region2: #{injector_net_forward.7} parent=0 // loop_pre_header
    _
  $region3: #{injector_net_forward.7} parent=0 // loop_header
    %s9 = sphi 0, %s13
    %p10 = scmp.ge.s32.totalorder %s9, 4
    %s16 = sphi 0, %s28
    %s17 = sphi 0, %s24
    %s18 = sphi 0, %s16
    %s19 = sphi 0, %s17
    %s20 = sphi 0, %s18
    %s21 = sphi 0, %s19
    %s33 = sphi 0, %s35
    %s36 = sphi 0, %s33
    %s37 = sphi 0, %s36
    %s53 = sphi 0, %s37
    %s57 = sphi 0, %s57
    %s59 = sphi 0, %s57
    %s60 = sphi 0, %s59
    %s74 = sphi 0, %s60
    %s78 = sphi 0, %s78
    %s80 = sphi 0, %s78
    %s81 = sphi 0, %s80
    %s95 = sphi 0, %s81
    %s103 = sphi 0, %s105
    %s106 = sphi 0, %s103
    %s107 = sphi 0, %s106
    %s123 = sphi 0, %s107
  $region4: #{injector_net_forward.7} parent=0 // loop_header_branch
    %12 = sbr.rel (%p10) target = $region8
  $region5: #{injector_net_forward.7} parent=0 // loop_body
    %s14 = ssub.s32 %s9, 1
    %s15 = ssub.s32 %s9, 2
    %s22 = sadd.s32 1, %s17
    %p23 = scmp.ge.s32.totalorder %s22, 1
    %s24 = scalar_select %p23, 0, %s22
    %s25 = sadd.s32 1, %s16
    %s26 = scalar_select %p23, %s25, %s16
    %p27 = scmp.ge.s32.totalorder %s26, 2
    %s28 = scalar_select %p27, 0, %s26
    %s29 = ssub.s32 %s16, %s28
    %s30 = ssub.s32 %s17, %s24
    %s31 = sor.u32 %s29, %s30
    %p32 = scmp.eq.s32.totalorder %s31, 0
    %s34 = sadd.s32 %s33, 1
    %s35 = scalar_select %p32, %s33, %s34
    %p38 = pneg %p32
    %p39 = scmp.eq.s32.totalorder %s9, 1
    %p40 = por %p38, %p39
    %p41 = scmp.ne.s32.totalorder %s33, %s36
    %p42 = scmp.eq.s32.totalorder %s9, 0
    %p43 = por %p41, %p42
    %p44 = scmp.ne.s32.totalorder %s33, %s36
    %p45 = scmp.eq.s32.totalorder %s14, 1
    %p46 = por %p44, %p45
    %p47 = scmp.ne.s32.totalorder %s36, %s37
    %p48 = scmp.eq.s32.totalorder %s14, 0
    %p49 = por %p47, %p48
    %p50 = scmp.ne.s32.totalorder %s36, %s37
    %p51 = scmp.eq.s32.totalorder %s15, 1
    %p52 = por %p50, %p51
    %p54 = scmp.ne.s32.totalorder %s37, %s53
    %p55 = scmp.eq.s32.totalorder %s15, 0
    %p56 = por %p54, %p55
    %s58 = sadd.s32 %s57, 1
    %p61 = scmp.eq.s32.totalorder %s9, 1
    %p62 = scmp.ne.s32.totalorder %s57, %s59
    %p63 = scmp.eq.s32.totalorder %s9, 0
    %p64 = por %p62, %p63
    %p65 = scmp.ne.s32.totalorder %s57, %s59
    %p66 = scmp.eq.s32.totalorder %s14, 1
    %p67 = por %p65, %p66
    %p68 = scmp.ne.s32.totalorder %s59, %s60
    %p69 = scmp.eq.s32.totalorder %s14, 0
    %p70 = por %p68, %p69
    %p71 = scmp.ne.s32.totalorder %s59, %s60
    %p72 = scmp.eq.s32.totalorder %s15, 1
    %p73 = por %p71, %p72
    %p75 = scmp.ne.s32.totalorder %s60, %s74
    %p76 = scmp.eq.s32.totalorder %s15, 0
    %p77 = por %p75, %p76
    %s79 = sadd.s32 %s78, 1
    %p82 = scmp.eq.s32.totalorder %s9, 1
    %p83 = scmp.ne.s32.totalorder %s78, %s80
    %p84 = scmp.eq.s32.totalorder %s9, 0
    %p85 = por %p83, %p84
    %p86 = scmp.ne.s32.totalorder %s78, %s80
    %p87 = scmp.eq.s32.totalorder %s14, 1
    %p88 = por %p86, %p87
    %p89 = scmp.ne.s32.totalorder %s80, %s81
    %p90 = scmp.eq.s32.totalorder %s14, 0
    %p91 = por %p89, %p90
    %p92 = scmp.ne.s32.totalorder %s80, %s81
    %p93 = scmp.eq.s32.totalorder %s15, 1
    %p94 = por %p92, %p93
    %p96 = scmp.ne.s32.totalorder %s81, %s95
    %p97 = scmp.eq.s32.totalorder %s15, 0
    %p98 = por %p96, %p97
    %s99 = ssub.s32 %s16, %s28
    %s100 = ssub.s32 %s17, %s24
    %s101 = sor.u32 %s99, %s100
    %p102 = scmp.eq.s32.totalorder %s101, 0
    %s104 = sadd.s32 %s103, 1
    %s105 = scalar_select %p102, %s103, %s104
    %p108 = pneg %p102
    %p109 = scmp.eq.s32.totalorder %s9, 1
    %p110 = por %p108, %p109
    %p111 = scmp.ne.s32.totalorder %s103, %s106
    %p112 = scmp.eq.s32.totalorder %s9, 0
    %p113 = por %p111, %p112
    %p114 = scmp.ne.s32.totalorder %s103, %s106
    %p115 = scmp.eq.s32.totalorder %s14, 1
    %p116 = por %p114, %p115
    %p117 = scmp.ne.s32.totalorder %s106, %s107
    %p118 = scmp.eq.s32.totalorder %s14, 0
    %p119 = por %p117, %p118
    %p120 = scmp.ne.s32.totalorder %s106, %s107
    %p121 = scmp.eq.s32.totalorder %s15, 1
    %p122 = por %p120, %p121
    %p124 = scmp.ne.s32.totalorder %s107, %s123
    %p125 = scmp.eq.s32.totalorder %s15, 0
    %p126 = por %p124, %p125
    %p127 = scmp.le.s32.totalorder 1, %s9
    %p128 = scmp.lt.s32.totalorder %s9, 3
    %p129 = pnand %p127, %p128
    %p130 = pneg %p129
    // Predicated region
    $region9: #{injector_net_forward.7} parent=5 // pred_check
      _
    $region10: #{injector_net_forward.7} parent=5 // pred_check_branch
      %132 = sbr.rel (%p129) target = $region12
    $region11: #{injector_net_forward.7} parent=5 // pred_region
      %s133 = ssub.s32 %s9, 1
      // Predicated region
      $region13: #{injector_net_forward.7} parent=11 // pred_check
        %p134 = pneg %p70
      $region14: #{injector_net_forward.7} parent=11 // pred_check_branch
        %136 = sbr.rel (%p134) target = $region16
      $region15: #{injector_net_forward.7} parent=11 // pred_region
        _
      $region16: #{injector_net_forward.7} parent=11 // pred_fallthru
        _
      // Predicated region
      $region17: #{injector_net_forward.7} parent=11 // pred_check
        %p137 = pneg %p91
      $region18: #{injector_net_forward.7} parent=11 // pred_check_branch
        %139 = sbr.rel (%p137) target = $region20
      $region19: #{injector_net_forward.7} parent=11 // pred_region
        _
      $region20: #{injector_net_forward.7} parent=11 // pred_fallthru
        _
    $region12: #{injector_net_forward.7} parent=5 // pred_fallthru
      _
    %p140 = scmp.lt.s32.totalorder %s9, 2
    // Predicated region
    $region21: #{injector_net_forward.7} parent=5 // pred_check
      %p141 = pneg %p140
    $region22: #{injector_net_forward.7} parent=5 // pred_check_branch
      %143 = sbr.rel (%p141) target = $region24
    $region23: #{injector_net_forward.7} parent=5 // pred_region
      // Predicated region
      $region25: #{injector_net_forward.7} parent=23 // pred_check
        %p144 = pneg %p43
      $region26: #{injector_net_forward.7} parent=23 // pred_check_branch
        %146 = sbr.rel (%p144) target = $region28
      $region27: #{injector_net_forward.7} parent=23 // pred_region
        %p147 = scmp.lt.s32.totalorder %s16, 1
        %s148 = scalar_select %p147, %s16, 1
        %p149 = scmp.lt.s32.totalorder %s17, 0
        %s150 = scalar_select %p149, %s17, 0
        %s151 = smul.addr %s148, 4
        %s152 = sadd.s32 %s150, %s151
        %s153 = smul.addr %s152, 8
        %s154 = scalar_lea.vmem %s0, %s153
      $region28: #{injector_net_forward.7} parent=23 // pred_fallthru
        _
    $region24: #{injector_net_forward.7} parent=5 // pred_fallthru
      _
    %p155 = scmp.le.s32.totalorder 1, %s9
    %p156 = scmp.lt.s32.totalorder %s9, 3
    %p157 = pnand %p155, %p156
    %p158 = pneg %p157
    // Predicated region
    $region29: #{injector_net_forward.7} parent=5 // pred_check
      _
    $region30: #{injector_net_forward.7} parent=5 // pred_check_branch
      %160 = sbr.rel (%p157) target = $region32
    $region31: #{injector_net_forward.7} parent=5 // pred_region
      %s161 = ssub.s32 %s9, 1
      %p162 = scmp.lt.s32.totalorder %s18, 1
      %s163 = scalar_select %p162, %s18, 1
      %p164 = scmp.lt.s32.totalorder %s19, 0
      %s165 = scalar_select %p164, %s19, 0
      %s166 = smul.addr %s163, 4
      %s167 = sadd.s32 %s165, %s166
      %s168 = smul.addr %s167, 8
      %s169 = scalar_lea.vmem %s0, %s168
      %p170 = pneg %p49
      %p171 = pneg %p46
      %p172 = pneg %p70
      %p173 = pneg %p67
      %p174 = pneg %p91
      %p175 = pneg %p88
      %p176 = pneg %p119
      %p177 = pneg %p116
      %p178 = scmp.lt.s32.totalorder %s18, 1
      %s179 = scalar_select %p178, %s18, 1
      %p180 = scmp.lt.s32.totalorder %s19, 0
      %s181 = scalar_select %p180, %s19, 0
      %s182 = sadd.s32 %s181, %s179
      %s183 = smul.addr %s182, 8
      %s184 = scalar_lea.vmem %s3, %s183
      %p185 = scmp.lt.s32.totalorder %s18, 1
      %s186 = scalar_select %p185, %s18, 1
      %p187 = scmp.lt.s32.totalorder %s19, 0
      %s188 = scalar_select %p187, %s19, 0
      %s189 = smul.addr %s186, 4
      %s190 = sadd.s32 %s188, %s189
      %s191 = smul.addr %s190, 8
      %s192 = scalar_lea.vmem %s0, %s191
      %p193 = scmp.lt.s32.totalorder %s18, 1
      %s194 = scalar_select %p193, %s18, 1
      %p195 = scmp.lt.s32.totalorder %s19, 0
      %s196 = scalar_select %p195, %s19, 0
      %s197 = sadd.s32 %s196, %s194
      %s198 = smul.addr %s197, 8
      %s199 = scalar_lea.vmem %s3, %s198
      %v200 = vld [vmem:[%s192] sm:$0xff]
      %v201 = vld [vmem:[%s192 + $0x8] sm:$0xff]
      %v202 = vld [vmem:[%s192 + $0x10] sm:$0xff]
      %v203 = vld [vmem:[%s192 + $0x18] sm:$0xff]
      %v204 = vld [vmem:[%s1] sm:$0xff]
      %v205 = vld [vmem:[%s2] sm:$0xff]
      %207 = vset.pattern.permute.xlu0 0
      %208 = vperm.xlu0 %207, %v205
      %v209 = vpop.permute.xlu0 %208
      %vm211 = vcmask 261120
      %v213 = vsel %vm211, %v204, 0
      %215 = vmatprep.subr.mxu0 0.0
      %216 = vmatpush1.msra.mxu0 %v200
      %217 = vmatprep.subr.mxu0 0.0
      %218 = vmatpush1.msra.mxu0 %v201
      %219 = vmatprep.subr.mxu0 0.0
      %220 = vmatpush1.msra.mxu0 %v202
      %221 = vmatprep.subr.mxu0 0.0
      %222 = vmatpush1.msra.mxu0 %v203
      %223 = vmatprep.subr.mxu0 0.0
      %224 = vmatpush1.msra.mxu0 0.0
      %225 = vmatprep.subr.mxu0 0.0
      %226 = vmatpush1.msra.mxu0 0.0
      %227 = vmatprep.subr.mxu0 0.0
      %228 = vmatpush1.msra.mxu0 0.0
      %229 = vmatprep.subr.mxu0 0.0
      %230 = vmatpush1.msra.mxu0 0.0
      %231 = vmatprep.subr.mxu0 0.0
      %232 = vmatpush1.msra.mxu0 0.0
      %233 = vmatprep.subr.mxu0 0.0
      %234 = vmatpush1.msra.mxu0 0.0
      %235 = vmatprep.subr.mxu0 0.0
      %236 = vmatpush1.msra.mxu0 0.0
      %237 = vmatprep.subr.mxu0 0.0
      %238 = vmatpush1.msra.mxu0 0.0
      %239 = vmatprep.subr.mxu0 0.0
      %240 = vmatpush1.msra.mxu0 0.0
      %241 = vmatprep.subr.mxu0 0.0
      %242 = vmatpush1.msra.mxu0 0.0
      %243 = vmatprep.subr.mxu0 0.0
      %244 = vmatpush1.msra.mxu0 0.0
      %245 = vmatprep.subr.mxu0 0.0
      %246 = vmatpush1.msra.mxu0 0.0
      %247 = vmatprep.subr.mxu0 0.0
      %248 = vmatpush1.msra.mxu0 0.0
      %249 = vmatprep.subr.mxu0 0.0
      %250 = vmatpush1.msra.mxu0 0.0
      %251 = vmatprep.subr.mxu0 0.0
      %252 = vmatpush1.msra.mxu0 0.0
      %253 = vmatprep.subr.mxu0 0.0
      %254 = vmatpush1.msra.mxu0 0.0
      %255 = vmatprep.subr.mxu0 0.0
      %256 = vmatpush1.msra.mxu0 0.0
      %257 = vmatprep.subr.mxu0 0.0
      %258 = vmatpush1.msra.mxu0 0.0
      %259 = vmatprep.subr.mxu0 0.0
      %260 = vmatpush1.msra.mxu0 0.0
      %261 = vmatprep.subr.mxu0 0.0
      %262 = vmatpush1.msra.mxu0 0.0
      %263 = vmatprep.subr.mxu0 0.0
      %264 = vmatpush1.msra.mxu0 0.0
      %265 = vmatprep.subr.mxu0 0.0
      %266 = vmatpush1.msra.mxu0 0.0
      %267 = vmatprep.subr.mxu0 0.0
      %268 = vmatpush1.msra.mxu0 0.0
      %269 = vmatprep.subr.mxu0 0.0
      %270 = vmatpush1.msra.mxu0 0.0
      %271 = vmatprep.subr.mxu0 0.0
      %272 = vmatpush1.msra.mxu0 0.0
      %273 = vmatprep.subr.mxu0 0.0
      %274 = vmatpush1.msra.mxu0 0.0
      %275 = vmatprep.subr.mxu0 0.0
      %276 = vmatpush1.msra.mxu0 0.0
      %277 = vmatprep.subr.mxu0 0.0
      %278 = vmatpush1.msra.mxu0 0.0
      %279 = vmatprep.mubr.f32.mxu0 0.0
      %280 = vmatmul.mubr.f32.gmra.mrb[0].mxu0 %v213
      %v281 = vpop.f32.mrb[0].mxu0
      %v282 = vadd.f32 %v209, %v281
      %v283 = vpop.f32.mrb[0].mxu0
      %284 = vdwg.mxu0
      %vm285 = vcmask 523264
      %286 = vst.msk [vmem:[%s199] sm:$0xff] %vm285, %v282
      %p287 = scmp.lt.s32.totalorder %s18, 1
      %s288 = scalar_select %p287, %s18, 1
      %p289 = scmp.lt.s32.totalorder %s19, 0
      %s290 = scalar_select %p289, %s19, 0
      %s291 = sadd.s32 %s290, %s288
      %s292 = smul.addr %s291, 8
      %s293 = scalar_lea.vmem %s3, %s292
      // Predicated region
      $region33: #{injector_net_forward.7} parent=31 // pred_check
        %p294 = pneg %p116
      $region34: #{injector_net_forward.7} parent=31 // pred_check_branch
        %296 = sbr.rel (%p294) target = $region36
      $region35: #{injector_net_forward.7} parent=31 // pred_region
        _
      $region36: #{injector_net_forward.7} parent=31 // pred_fallthru
        _
    $region32: #{injector_net_forward.7} parent=5 // pred_fallthru
      _
    %p297 = scmp.le.s32.totalorder 2, %s9
    // Predicated region
    $region37: #{injector_net_forward.7} parent=5 // pred_check
      %p298 = pneg %p297
    $region38: #{injector_net_forward.7} parent=5 // pred_check_branch
      %300 = sbr.rel (%p298) target = $region40
    $region39: #{injector_net_forward.7} parent=5 // pred_region
      %s301 = ssub.s32 %s9, 2
      // Predicated region
      $region41: #{injector_net_forward.7} parent=39 // pred_check
        %p302 = pneg %p122
      $region42: #{injector_net_forward.7} parent=39 // pred_check_branch
        %304 = sbr.rel (%p302) target = $region44
      $region43: #{injector_net_forward.7} parent=39 // pred_region
        %p305 = scmp.lt.s32.totalorder %s20, 1
        %s306 = scalar_select %p305, %s20, 1
        %p307 = scmp.lt.s32.totalorder %s21, 0
        %s308 = scalar_select %p307, %s21, 0
        %s309 = sadd.s32 %s308, %s306
        %s310 = smul.addr %s309, 8
        %s311 = scalar_lea.vmem %s3, %s310
      $region44: #{injector_net_forward.7} parent=39 // pred_fallthru
        _
    $region40: #{injector_net_forward.7} parent=5 // pred_fallthru
      _
  $region6: #{injector_net_forward.7} parent=0 // loop_footer
    %s13 = sadd.s32 1, %s9
  $region7: #{injector_net_forward.7} parent=0 // loop_footer_branch
    %8 = sbr.rel target = $region3
  $region8: #{injector_net_forward.7} parent=0 // loop_exit
    _

// kernel: injector_net_forward.8
$region0: #{injector_net_forward.8}
  #allocation0 [shape = 'u32[]', space=smem, size = 0x4, offset = 0x4, fixed_abs, tag = 'smem constant byte address 0x4 - core index']
  #allocation1 [shape = 'u32[144,128]{1,0:T(1,128)}', space=vmem, size = 0x12000, scoped, tag = 'internal scratch']
  %s0 = inlined_call_operand.vmem [shape: f32[2,32,16], index: 0, kind: input, shape index: {}]
  %s1 = inlined_call_operand.vmem [shape: f32[8,32], index: 1, kind: input, shape index: {}]
  %s2 = inlined_call_operand.vmem [shape: f32[8,1], index: 2, kind: input, shape index: {}]
  %s3 = inlined_call_operand.vmem [shape: f32[2,8,16], index: 3, kind: output, shape index: {}]
  %s4 = sld [smem:[#allocation0]]
  $region45: #{injector_net_forward.8} parent=0
    _
  %s6 = ssub.s32 1, %s4
  %s7 = scalar_select 0, %s6, %s4
  loop: start=0, step=1, limit=4
  $region2: #{injector_net_forward.8} parent=0 // loop_pre_header
    _
  $region3: #{injector_net_forward.8} parent=0 // loop_header
    %s9 = sphi 0, %s13
    %p10 = scmp.ge.s32.totalorder %s9, 4
    %s16 = sphi 0, %s28
    %s17 = sphi 0, %s24
    %s18 = sphi 0, %s16
    %s19 = sphi 0, %s17
    %s20 = sphi 0, %s18
    %s21 = sphi 0, %s19
    %s33 = sphi 0, %s35
    %s36 = sphi 0, %s33
    %s37 = sphi 0, %s36
    %s53 = sphi 0, %s37
    %s57 = sphi 0, %s57
    %s59 = sphi 0, %s57
    %s60 = sphi 0, %s59
    %s74 = sphi 0, %s60
    %s78 = sphi 0, %s78
    %s80 = sphi 0, %s78
    %s81 = sphi 0, %s80
    %s95 = sphi 0, %s81
    %s103 = sphi 0, %s105
    %s106 = sphi 0, %s103
    %s107 = sphi 0, %s106
    %s123 = sphi 0, %s107
  $region4: #{injector_net_forward.8} parent=0 // loop_header_branch
    %12 = sbr.rel (%p10) target = $region8
  $region5: #{injector_net_forward.8} parent=0 // loop_body
    %s14 = ssub.s32 %s9, 1
    %s15 = ssub.s32 %s9, 2
    %s22 = sadd.s32 1, %s17
    %p23 = scmp.ge.s32.totalorder %s22, 1
    %s24 = scalar_select %p23, 0, %s22
    %s25 = sadd.s32 1, %s16
    %s26 = scalar_select %p23, %s25, %s16
    %p27 = scmp.ge.s32.totalorder %s26, 2
    %s28 = scalar_select %p27, 0, %s26
    %s29 = ssub.s32 %s16, %s28
    %s30 = ssub.s32 %s17, %s24
    %s31 = sor.u32 %s29, %s30
    %p32 = scmp.eq.s32.totalorder %s31, 0
    %s34 = sadd.s32 %s33, 1
    %s35 = scalar_select %p32, %s33, %s34
    %p38 = pneg %p32
    %p39 = scmp.eq.s32.totalorder %s9, 1
    %p40 = por %p38, %p39
    %p41 = scmp.ne.s32.totalorder %s33, %s36
    %p42 = scmp.eq.s32.totalorder %s9, 0
    %p43 = por %p41, %p42
    %p44 = scmp.ne.s32.totalorder %s33, %s36
    %p45 = scmp.eq.s32.totalorder %s14, 1
    %p46 = por %p44, %p45
    %p47 = scmp.ne.s32.totalorder %s36, %s37
    %p48 = scmp.eq.s32.totalorder %s14, 0
    %p49 = por %p47, %p48
    %p50 = scmp.ne.s32.totalorder %s36, %s37
    %p51 = scmp.eq.s32.totalorder %s15, 1
    %p52 = por %p50, %p51
    %p54 = scmp.ne.s32.totalorder %s37, %s53
    %p55 = scmp.eq.s32.totalorder %s15, 0
    %p56 = por %p54, %p55
    %s58 = sadd.s32 %s57, 1
    %p61 = scmp.eq.s32.totalorder %s9, 1
    %p62 = scmp.ne.s32.totalorder %s57, %s59
    %p63 = scmp.eq.s32.totalorder %s9, 0
    %p64 = por %p62, %p63
    %p65 = scmp.ne.s32.totalorder %s57, %s59
    %p66 = scmp.eq.s32.totalorder %s14, 1
    %p67 = por %p65, %p66
    %p68 = scmp.ne.s32.totalorder %s59, %s60
    %p69 = scmp.eq.s32.totalorder %s14, 0
    %p70 = por %p68, %p69
    %p71 = scmp.ne.s32.totalorder %s59, %s60
    %p72 = scmp.eq.s32.totalorder %s15, 1
    %p73 = por %p71, %p72
    %p75 = scmp.ne.s32.totalorder %s60, %s74
    %p76 = scmp.eq.s32.totalorder %s15, 0
    %p77 = por %p75, %p76
    %s79 = sadd.s32 %s78, 1
    %p82 = scmp.eq.s32.totalorder %s9, 1
    %p83 = scmp.ne.s32.totalorder %s78, %s80
    %p84 = scmp.eq.s32.totalorder %s9, 0
    %p85 = por %p83, %p84
    %p86 = scmp.ne.s32.totalorder %s78, %s80
    %p87 = scmp.eq.s32.totalorder %s14, 1
    %p88 = por %p86, %p87
    %p89 = scmp.ne.s32.totalorder %s80, %s81
    %p90 = scmp.eq.s32.totalorder %s14, 0
    %p91 = por %p89, %p90
    %p92 = scmp.ne.s32.totalorder %s80, %s81
    %p93 = scmp.eq.s32.totalorder %s15, 1
    %p94 = por %p92, %p93
    %p96 = scmp.ne.s32.totalorder %s81, %s95
    %p97 = scmp.eq.s32.totalorder %s15, 0
    %p98 = por %p96, %p97
    %s99 = ssub.s32 %s16, %s28
    %s100 = ssub.s32 %s17, %s24
    %s101 = sor.u32 %s99, %s100
    %p102 = scmp.eq.s32.totalorder %s101, 0
    %s104 = sadd.s32 %s103, 1
    %s105 = scalar_select %p102, %s103, %s104
    %p108 = pneg %p102
    %p109 = scmp.eq.s32.totalorder %s9, 1
    %p110 = por %p108, %p109
    %p111 = scmp.ne.s32.totalorder %s103, %s106
    %p112 = scmp.eq.s32.totalorder %s9, 0
    %p113 = por %p111, %p112
    %p114 = scmp.ne.s32.totalorder %s103, %s106
    %p115 = scmp.eq.s32.totalorder %s14, 1
    %p116 = por %p114, %p115
    %p117 = scmp.ne.s32.totalorder %s106, %s107
    %p118 = scmp.eq.s32.totalorder %s14, 0
    %p119 = por %p117, %p118
    %p120 = scmp.ne.s32.totalorder %s106, %s107
    %p121 = scmp.eq.s32.totalorder %s15, 1
    %p122 = por %p120, %p121
    %p124 = scmp.ne.s32.totalorder %s107, %s123
    %p125 = scmp.eq.s32.totalorder %s15, 0
    %p126 = por %p124, %p125
    %p127 = scmp.le.s32.totalorder 1, %s9
    %p128 = scmp.lt.s32.totalorder %s9, 3
    %p129 = pnand %p127, %p128
    %p130 = pneg %p129
    // Predicated region
    $region9: #{injector_net_forward.8} parent=5 // pred_check
      _
    $region10: #{injector_net_forward.8} parent=5 // pred_check_branch
      %132 = sbr.rel (%p129) target = $region12
    $region11: #{injector_net_forward.8} parent=5 // pred_region
      %s133 = ssub.s32 %s9, 1
      // Predicated region
      $region13: #{injector_net_forward.8} parent=11 // pred_check
        %p134 = pneg %p70
      $region14: #{injector_net_forward.8} parent=11 // pred_check_branch
        %136 = sbr.rel (%p134) target = $region16
      $region15: #{injector_net_forward.8} parent=11 // pred_region
        _
      $region16: #{injector_net_forward.8} parent=11 // pred_fallthru
        _
      // Predicated region
      $region17: #{injector_net_forward.8} parent=11 // pred_check
        %p137 = pneg %p91
      $region18: #{injector_net_forward.8} parent=11 // pred_check_branch
        %139 = sbr.rel (%p137) target = $region20
      $region19: #{injector_net_forward.8} parent=11 // pred_region
        _
      $region20: #{injector_net_forward.8} parent=11 // pred_fallthru
        _
    $region12: #{injector_net_forward.8} parent=5 // pred_fallthru
      _
    %p140 = scmp.lt.s32.totalorder %s9, 2
    // Predicated region
    $region21: #{injector_net_forward.8} parent=5 // pred_check
      %p141 = pneg %p140
    $region22: #{injector_net_forward.8} parent=5 // pred_check_branch
      %143 = sbr.rel (%p141) target = $region24
    $region23: #{injector_net_forward.8} parent=5 // pred_region
      // Predicated region
      $region25: #{injector_net_forward.8} parent=23 // pred_check
        %p144 = pneg %p43
      $region26: #{injector_net_forward.8} parent=23 // pred_check_branch
        %146 = sbr.rel (%p144) target = $region28
      $region27: #{injector_net_forward.8} parent=23 // pred_region
        %p147 = scmp.lt.s32.totalorder %s16, 1
        %s148 = scalar_select %p147, %s16, 1
        %p149 = scmp.lt.s32.totalorder %s17, 0
        %s150 = scalar_select %p149, %s17, 0
        %s151 = smul.addr %s148, 4
        %s152 = sadd.s32 %s150, %s151
        %s153 = smul.addr %s152, 8
        %s154 = scalar_lea.vmem %s0, %s153
      $region28: #{injector_net_forward.8} parent=23 // pred_fallthru
        _
    $region24: #{injector_net_forward.8} parent=5 // pred_fallthru
      _
    %p155 = scmp.le.s32.totalorder 1, %s9
    %p156 = scmp.lt.s32.totalorder %s9, 3
    %p157 = pnand %p155, %p156
    %p158 = pneg %p157
    // Predicated region
    $region29: #{injector_net_forward.8} parent=5 // pred_check
      _
    $region30: #{injector_net_forward.8} parent=5 // pred_check_branch
      %160 = sbr.rel (%p157) target = $region32
    $region31: #{injector_net_forward.8} parent=5 // pred_region
      %s161 = ssub.s32 %s9, 1
      %p162 = scmp.lt.s32.totalorder %s18, 1
      %s163 = scalar_select %p162, %s18, 1
      %p164 = scmp.lt.s32.totalorder %s19, 0
      %s165 = scalar_select %p164, %s19, 0
      %s166 = smul.addr %s163, 4
      %s167 = sadd.s32 %s165, %s166
      %s168 = smul.addr %s167, 8
      %s169 = scalar_lea.vmem %s0, %s168
      %p170 = pneg %p49
      %p171 = pneg %p46
      %p172 = pneg %p70
      %p173 = pneg %p67
      %p174 = pneg %p91
      %p175 = pneg %p88
      %p176 = pneg %p119
      %p177 = pneg %p116
      %p178 = scmp.lt.s32.totalorder %s18, 1
      %s179 = scalar_select %p178, %s18, 1
      %p180 = scmp.lt.s32.totalorder %s19, 0
      %s181 = scalar_select %p180, %s19, 0
      %s182 = sadd.s32 %s181, %s179
      %s183 = smul.addr %s182, 8
      %s184 = scalar_lea.vmem %s3, %s183
      %p185 = scmp.lt.s32.totalorder %s18, 1
      %s186 = scalar_select %p185, %s18, 1
      %p187 = scmp.lt.s32.totalorder %s19, 0
      %s188 = scalar_select %p187, %s19, 0
      %s189 = smul.addr %s186, 4
      %s190 = sadd.s32 %s188, %s189
      %s191 = smul.addr %s190, 8
      %s192 = scalar_lea.vmem %s0, %s191
      %p193 = scmp.lt.s32.totalorder %s18, 1
      %s194 = scalar_select %p193, %s18, 1
      %p195 = scmp.lt.s32.totalorder %s19, 0
      %s196 = scalar_select %p195, %s19, 0
      %s197 = sadd.s32 %s196, %s194
      %s198 = smul.addr %s197, 8
      %s199 = scalar_lea.vmem %s3, %s198
      %v200 = vld [vmem:[%s192] sm:$0xff]
      %v201 = vld [vmem:[%s192 + $0x8] sm:$0xff]
      %v202 = vld [vmem:[%s192 + $0x10] sm:$0xff]
      %v203 = vld [vmem:[%s192 + $0x18] sm:$0xff]
      %v204 = vld [vmem:[%s1] sm:$0xff]
      %v205 = vld [vmem:[%s2] sm:$0xff]
      %207 = vset.pattern.permute.xlu0 0
      %208 = vperm.xlu0 %207, %v205
      %v209 = vpop.permute.xlu0 %208
      %vm211 = vcmask 261120
      %v213 = vsel %vm211, %v204, 0
      %215 = vmatprep.subr.mxu0 0.0
      %216 = vmatpush1.msra.mxu0 %v200
      %217 = vmatprep.subr.mxu0 0.0
      %218 = vmatpush1.msra.mxu0 %v201
      %219 = vmatprep.subr.mxu0 0.0
      %220 = vmatpush1.msra.mxu0 %v202
      %221 = vmatprep.subr.mxu0 0.0
      %222 = vmatpush1.msra.mxu0 %v203
      %223 = vmatprep.subr.mxu0 0.0
      %224 = vmatpush1.msra.mxu0 0.0
      %225 = vmatprep.subr.mxu0 0.0
      %226 = vmatpush1.msra.mxu0 0.0
      %227 = vmatprep.subr.mxu0 0.0
      %228 = vmatpush1.msra.mxu0 0.0
      %229 = vmatprep.subr.mxu0 0.0
      %230 = vmatpush1.msra.mxu0 0.0
      %231 = vmatprep.subr.mxu0 0.0
      %232 = vmatpush1.msra.mxu0 0.0
      %233 = vmatprep.subr.mxu0 0.0
      %234 = vmatpush1.msra.mxu0 0.0
      %235 = vmatprep.subr.mxu0 0.0
      %236 = vmatpush1.msra.mxu0 0.0
      %237 = vmatprep.subr.mxu0 0.0
      %238 = vmatpush1.msra.mxu0 0.0
      %239 = vmatprep.subr.mxu0 0.0
      %240 = vmatpush1.msra.mxu0 0.0
      %241 = vmatprep.subr.mxu0 0.0
      %242 = vmatpush1.msra.mxu0 0.0
      %243 = vmatprep.subr.mxu0 0.0
      %244 = vmatpush1.msra.mxu0 0.0
      %245 = vmatprep.subr.mxu0 0.0
      %246 = vmatpush1.msra.mxu0 0.0
      %247 = vmatprep.subr.mxu0 0.0
      %248 = vmatpush1.msra.mxu0 0.0
      %249 = vmatprep.subr.mxu0 0.0
      %250 = vmatpush1.msra.mxu0 0.0
      %251 = vmatprep.subr.mxu0 0.0
      %252 = vmatpush1.msra.mxu0 0.0
      %253 = vmatprep.subr.mxu0 0.0
      %254 = vmatpush1.msra.mxu0 0.0
      %255 = vmatprep.subr.mxu0 0.0
      %256 = vmatpush1.msra.mxu0 0.0
      %257 = vmatprep.subr.mxu0 0.0
      %258 = vmatpush1.msra.mxu0 0.0
      %259 = vmatprep.subr.mxu0 0.0
      %260 = vmatpush1.msra.mxu0 0.0
      %261 = vmatprep.subr.mxu0 0.0
      %262 = vmatpush1.msra.mxu0 0.0
      %263 = vmatprep.subr.mxu0 0.0
      %264 = vmatpush1.msra.mxu0 0.0
      %265 = vmatprep.subr.mxu0 0.0
      %266 = vmatpush1.msra.mxu0 0.0
      %267 = vmatprep.subr.mxu0 0.0
      %268 = vmatpush1.msra.mxu0 0.0
      %269 = vmatprep.subr.mxu0 0.0
      %270 = vmatpush1.msra.mxu0 0.0
      %271 = vmatprep.subr.mxu0 0.0
      %272 = vmatpush1.msra.mxu0 0.0
      %273 = vmatprep.subr.mxu0 0.0
      %274 = vmatpush1.msra.mxu0 0.0
      %275 = vmatprep.subr.mxu0 0.0
      %276 = vmatpush1.msra.mxu0 0.0
      %277 = vmatprep.subr.mxu0 0.0
      %278 = vmatpush1.msra.mxu0 0.0
      %279 = vmatprep.mubr.f32.mxu0 0.0
      %280 = vmatmul.mubr.f32.gmra.mrb[0].mxu0 %v213
      %v281 = vpop.f32.mrb[0].mxu0
      %v282 = vadd.f32 %v209, %v281
      %v283 = vpop.f32.mrb[0].mxu0
      %284 = vdwg.mxu0
      %vm285 = vcmask 130048
      %286 = vst.msk [vmem:[%s199] sm:$0xff] %vm285, %v282
      %p287 = scmp.lt.s32.totalorder %s18, 1
      %s288 = scalar_select %p287, %s18, 1
      %p289 = scmp.lt.s32.totalorder %s19, 0
      %s290 = scalar_select %p289, %s19, 0
      %s291 = sadd.s32 %s290, %s288
      %s292 = smul.addr %s291, 8
      %s293 = scalar_lea.vmem %s3, %s292
      // Predicated region
      $region33: #{injector_net_forward.8} parent=31 // pred_check
        %p294 = pneg %p116
      $region34: #{injector_net_forward.8} parent=31 // pred_check_branch
        %296 = sbr.rel (%p294) target = $region36
      $region35: #{injector_net_forward.8} parent=31 // pred_region
        _
      $region36: #{injector_net_forward.8} parent=31 // pred_fallthru
        _
    $region32: #{injector_net_forward.8} parent=5 // pred_fallthru
      _
    %p297 = scmp.le.s32.totalorder 2, %s9
    // Predicated region
    $region37: #{injector_net_forward.8} parent=5 // pred_check
      %p298 = pneg %p297
    $region38: #{injector_net_forward.8} parent=5 // pred_check_branch
      %300 = sbr.rel (%p298) target = $region40
    $region39: #{injector_net_forward.8} parent=5 // pred_region
      %s301 = ssub.s32 %s9, 2
      // Predicated region
      $region41: #{injector_net_forward.8} parent=39 // pred_check
        %p302 = pneg %p122
      $region42: #{injector_net_forward.8} parent=39 // pred_check_branch
        %304 = sbr.rel (%p302) target = $region44
      $region43: #{injector_net_forward.8} parent=39 // pred_region
        %p305 = scmp.lt.s32.totalorder %s20, 1
        %s306 = scalar_select %p305, %s20, 1
        %p307 = scmp.lt.s32.totalorder %s21, 0
        %s308 = scalar_select %p307, %s21, 0
        %s309 = sadd.s32 %s308, %s306
        %s310 = smul.addr %s309, 8
        %s311 = scalar_lea.vmem %s3, %s310
      $region44: #{injector_net_forward.8} parent=39 // pred_fallthru
        _
    $region40: #{injector_net_forward.8} parent=5 // pred_fallthru
      _
  $region6: #{injector_net_forward.8} parent=0 // loop_footer
    %s13 = sadd.s32 1, %s9
  $region7: #{injector_net_forward.8} parent=0 // loop_footer_branch
    %8 = sbr.rel target = $region3
  $region8: #{injector_net_forward.8} parent=0 // loop_exit
    _

// kernel: injector_net_forward.9
$region0: #{injector_net_forward.9}
  #allocation0 [shape = 'u32[]', space=smem, size = 0x4, offset = 0x4, fixed_abs, tag = 'smem constant byte address 0x4 - core index']
  #allocation1 [shape = 'u32[144,128]{1,0:T(1,128)}', space=vmem, size = 0x12000, scoped, tag = 'internal scratch']
  %s0 = inlined_call_operand.vmem [shape: f32[2,32,4], index: 0, kind: input, shape index: {}]
  %s1 = inlined_call_operand.vmem [shape: f32[8,32], index: 1, kind: input, shape index: {}]
  %s2 = inlined_call_operand.vmem [shape: f32[8,1], index: 2, kind: input, shape index: {}]
  %s3 = inlined_call_operand.vmem [shape: f32[2,8,4], index: 3, kind: output, shape index: {}]
  %s4 = sld [smem:[#allocation0]]
  $region45: #{injector_net_forward.9} parent=0
    _
  %s6 = ssub.s32 1, %s4
  %s7 = scalar_select 0, %s6, %s4
  loop: start=0, step=1, limit=4
  $region2: #{injector_net_forward.9} parent=0 // loop_pre_header
    _
  $region3: #{injector_net_forward.9} parent=0 // loop_header
    %s9 = sphi 0, %s13
    %p10 = scmp.ge.s32.totalorder %s9, 4
    %s16 = sphi 0, %s28
    %s17 = sphi 0, %s24
    %s18 = sphi 0, %s16
    %s19 = sphi 0, %s17
    %s20 = sphi 0, %s18
    %s21 = sphi 0, %s19
    %s33 = sphi 0, %s35
    %s36 = sphi 0, %s33
    %s37 = sphi 0, %s36
    %s53 = sphi 0, %s37
    %s57 = sphi 0, %s57
    %s59 = sphi 0, %s57
    %s60 = sphi 0, %s59
    %s74 = sphi 0, %s60
    %s78 = sphi 0, %s78
    %s80 = sphi 0, %s78
    %s81 = sphi 0, %s80
    %s95 = sphi 0, %s81
    %s103 = sphi 0, %s105
    %s106 = sphi 0, %s103
    %s107 = sphi 0, %s106
    %s123 = sphi 0, %s107
  $region4: #{injector_net_forward.9} parent=0 // loop_header_branch
    %12 = sbr.rel (%p10) target = $region8
  $region5: #{injector_net_forward.9} parent=0 // loop_body
    %s14 = ssub.s32 %s9, 1
    %s15 = ssub.s32 %s9, 2
    %s22 = sadd.s32 1, %s17
    %p23 = scmp.ge.s32.totalorder %s22, 1
    %s24 = scalar_select %p23, 0, %s22
    %s25 = sadd.s32 1, %s16
    %s26 = scalar_select %p23, %s25, %s16
    %p27 = scmp.ge.s32.totalorder %s26, 2
    %s28 = scalar_select %p27, 0, %s26
    %s29 = ssub.s32 %s16, %s28
    %s30 = ssub.s32 %s17, %s24
    %s31 = sor.u32 %s29, %s30
    %p32 = scmp.eq.s32.totalorder %s31, 0
    %s34 = sadd.s32 %s33, 1
    %s35 = scalar_select %p32, %s33, %s34
    %p38 = pneg %p32
    %p39 = scmp.eq.s32.totalorder %s9, 1
    %p40 = por %p38, %p39
    %p41 = scmp.ne.s32.totalorder %s33, %s36
    %p42 = scmp.eq.s32.totalorder %s9, 0
    %p43 = por %p41, %p42
    %p44 = scmp.ne.s32.totalorder %s33, %s36
    %p45 = scmp.eq.s32.totalorder %s14, 1
    %p46 = por %p44, %p45
    %p47 = scmp.ne.s32.totalorder %s36, %s37
    %p48 = scmp.eq.s32.totalorder %s14, 0
    %p49 = por %p47, %p48
    %p50 = scmp.ne.s32.totalorder %s36, %s37
    %p51 = scmp.eq.s32.totalorder %s15, 1
    %p52 = por %p50, %p51
    %p54 = scmp.ne.s32.totalorder %s37, %s53
    %p55 = scmp.eq.s32.totalorder %s15, 0
    %p56 = por %p54, %p55
    %s58 = sadd.s32 %s57, 1
    %p61 = scmp.eq.s32.totalorder %s9, 1
    %p62 = scmp.ne.s32.totalorder %s57, %s59
    %p63 = scmp.eq.s32.totalorder %s9, 0
    %p64 = por %p62, %p63
    %p65 = scmp.ne.s32.totalorder %s57, %s59
    %p66 = scmp.eq.s32.totalorder %s14, 1
    %p67 = por %p65, %p66
    %p68 = scmp.ne.s32.totalorder %s59, %s60
    %p69 = scmp.eq.s32.totalorder %s14, 0
    %p70 = por %p68, %p69
    %p71 = scmp.ne.s32.totalorder %s59, %s60
    %p72 = scmp.eq.s32.totalorder %s15, 1
    %p73 = por %p71, %p72
    %p75 = scmp.ne.s32.totalorder %s60, %s74
    %p76 = scmp.eq.s32.totalorder %s15, 0
    %p77 = por %p75, %p76
    %s79 = sadd.s32 %s78, 1
    %p82 = scmp.eq.s32.totalorder %s9, 1
    %p83 = scmp.ne.s32.totalorder %s78, %s80
    %p84 = scmp.eq.s32.totalorder %s9, 0
    %p85 = por %p83, %p84
    %p86 = scmp.ne.s32.totalorder %s78, %s80
    %p87 = scmp.eq.s32.totalorder %s14, 1
    %p88 = por %p86, %p87
    %p89 = scmp.ne.s32.totalorder %s80, %s81
    %p90 = scmp.eq.s32.totalorder %s14, 0
    %p91 = por %p89, %p90
    %p92 = scmp.ne.s32.totalorder %s80, %s81
    %p93 = scmp.eq.s32.totalorder %s15, 1
    %p94 = por %p92, %p93
    %p96 = scmp.ne.s32.totalorder %s81, %s95
    %p97 = scmp.eq.s32.totalorder %s15, 0
    %p98 = por %p96, %p97
    %s99 = ssub.s32 %s16, %s28
    %s100 = ssub.s32 %s17, %s24
    %s101 = sor.u32 %s99, %s100
    %p102 = scmp.eq.s32.totalorder %s101, 0
    %s104 = sadd.s32 %s103, 1
    %s105 = scalar_select %p102, %s103, %s104
    %p108 = pneg %p102
    %p109 = scmp.eq.s32.totalorder %s9, 1
    %p110 = por %p108, %p109
    %p111 = scmp.ne.s32.totalorder %s103, %s106
    %p112 = scmp.eq.s32.totalorder %s9, 0
    %p113 = por %p111, %p112
    %p114 = scmp.ne.s32.totalorder %s103, %s106
    %p115 = scmp.eq.s32.totalorder %s14, 1
    %p116 = por %p114, %p115
    %p117 = scmp.ne.s32.totalorder %s106, %s107
    %p118 = scmp.eq.s32.totalorder %s14, 0
    %p119 = por %p117, %p118
    %p120 = scmp.ne.s32.totalorder %s106, %s107
    %p121 = scmp.eq.s32.totalorder %s15, 1
    %p122 = por %p120, %p121
    %p124 = scmp.ne.s32.totalorder %s107, %s123
    %p125 = scmp.eq.s32.totalorder %s15, 0
    %p126 = por %p124, %p125
    %p127 = scmp.le.s32.totalorder 1, %s9
    %p128 = scmp.lt.s32.totalorder %s9, 3
    %p129 = pnand %p127, %p128
    %p130 = pneg %p129
    // Predicated region
    $region9: #{injector_net_forward.9} parent=5 // pred_check
      _
    $region10: #{injector_net_forward.9} parent=5 // pred_check_branch
      %132 = sbr.rel (%p129) target = $region12
    $region11: #{injector_net_forward.9} parent=5 // pred_region
      %s133 = ssub.s32 %s9, 1
      // Predicated region
      $region13: #{injector_net_forward.9} parent=11 // pred_check
        %p134 = pneg %p70
      $region14: #{injector_net_forward.9} parent=11 // pred_check_branch
        %136 = sbr.rel (%p134) target = $region16
      $region15: #{injector_net_forward.9} parent=11 // pred_region
        _
      $region16: #{injector_net_forward.9} parent=11 // pred_fallthru
        _
      // Predicated region
      $region17: #{injector_net_forward.9} parent=11 // pred_check
        %p137 = pneg %p91
      $region18: #{injector_net_forward.9} parent=11 // pred_check_branch
        %139 = sbr.rel (%p137) target = $region20
      $region19: #{injector_net_forward.9} parent=11 // pred_region
        _
      $region20: #{injector_net_forward.9} parent=11 // pred_fallthru
        _
    $region12: #{injector_net_forward.9} parent=5 // pred_fallthru
      _
    %p140 = scmp.lt.s32.totalorder %s9, 2
    // Predicated region
    $region21: #{injector_net_forward.9} parent=5 // pred_check
      %p141 = pneg %p140
    $region22: #{injector_net_forward.9} parent=5 // pred_check_branch
      %143 = sbr.rel (%p141) target = $region24
    $region23: #{injector_net_forward.9} parent=5 // pred_region
      // Predicated region
      $region25: #{injector_net_forward.9} parent=23 // pred_check
        %p144 = pneg %p43
      $region26: #{injector_net_forward.9} parent=23 // pred_check_branch
        %146 = sbr.rel (%p144) target = $region28
      $region27: #{injector_net_forward.9} parent=23 // pred_region
        %p147 = scmp.lt.s32.totalorder %s16, 1
        %s148 = scalar_select %p147, %s16, 1
        %p149 = scmp.lt.s32.totalorder %s17, 0
        %s150 = scalar_select %p149, %s17, 0
        %s151 = smul.addr %s148, 4
        %s152 = sadd.s32 %s150, %s151
        %s153 = smul.addr %s152, 8
        %s154 = scalar_lea.vmem %s0, %s153
      $region28: #{injector_net_forward.9} parent=23 // pred_fallthru
        _
    $region24: #{injector_net_forward.9} parent=5 // pred_fallthru
      _
    %p155 = scmp.le.s32.totalorder 1, %s9
    %p156 = scmp.lt.s32.totalorder %s9, 3
    %p157 = pnand %p155, %p156
    %p158 = pneg %p157
    // Predicated region
    $region29: #{injector_net_forward.9} parent=5 // pred_check
      _
    $region30: #{injector_net_forward.9} parent=5 // pred_check_branch
      %160 = sbr.rel (%p157) target = $region32
    $region31: #{injector_net_forward.9} parent=5 // pred_region
      %s161 = ssub.s32 %s9, 1
      %p162 = scmp.lt.s32.totalorder %s18, 1
      %s163 = scalar_select %p162, %s18, 1
      %p164 = scmp.lt.s32.totalorder %s19, 0
      %s165 = scalar_select %p164, %s19, 0
      %s166 = smul.addr %s163, 4
      %s167 = sadd.s32 %s165, %s166
      %s168 = smul.addr %s167, 8
      %s169 = scalar_lea.vmem %s0, %s168
      %p170 = pneg %p49
      %p171 = pneg %p46
      %p172 = pneg %p70
      %p173 = pneg %p67
      %p174 = pneg %p91
      %p175 = pneg %p88
      %p176 = pneg %p119
      %p177 = pneg %p116
      %p178 = scmp.lt.s32.totalorder %s18, 1
      %s179 = scalar_select %p178, %s18, 1
      %p180 = scmp.lt.s32.totalorder %s19, 0
      %s181 = scalar_select %p180, %s19, 0
      %s182 = sadd.s32 %s181, %s179
      %s183 = smul.addr %s182, 8
      %s184 = scalar_lea.vmem %s3, %s183
      %p185 = scmp.lt.s32.totalorder %s18, 1
      %s186 = scalar_select %p185, %s18, 1
      %p187 = scmp.lt.s32.totalorder %s19, 0
      %s188 = scalar_select %p187, %s19, 0
      %s189 = smul.addr %s186, 4
      %s190 = sadd.s32 %s188, %s189
      %s191 = smul.addr %s190, 8
      %s192 = scalar_lea.vmem %s0, %s191
      %p193 = scmp.lt.s32.totalorder %s18, 1
      %s194 = scalar_select %p193, %s18, 1
      %p195 = scmp.lt.s32.totalorder %s19, 0
      %s196 = scalar_select %p195, %s19, 0
      %s197 = sadd.s32 %s196, %s194
      %s198 = smul.addr %s197, 8
      %s199 = scalar_lea.vmem %s3, %s198
      %v200 = vld [vmem:[%s192] sm:$0xff]
      %v201 = vld [vmem:[%s192 + $0x8] sm:$0xff]
      %v202 = vld [vmem:[%s192 + $0x10] sm:$0xff]
      %v203 = vld [vmem:[%s192 + $0x18] sm:$0xff]
      %v204 = vld [vmem:[%s1] sm:$0xff]
      %v205 = vld [vmem:[%s2] sm:$0xff]
      %207 = vset.pattern.permute.xlu0 0
      %208 = vperm.xlu0 %207, %v205
      %v209 = vpop.permute.xlu0 %208
      %vm211 = vcmask 261120
      %v213 = vsel %vm211, %v204, 0
      %215 = vmatprep.subr.mxu0 0.0
      %216 = vmatpush1.msra.mxu0 %v200
      %217 = vmatprep.subr.mxu0 0.0
      %218 = vmatpush1.msra.mxu0 %v201
      %219 = vmatprep.subr.mxu0 0.0
      %220 = vmatpush1.msra.mxu0 %v202
      %221 = vmatprep.subr.mxu0 0.0
      %222 = vmatpush1.msra.mxu0 %v203
      %223 = vmatprep.subr.mxu0 0.0
      %224 = vmatpush1.msra.mxu0 0.0
      %225 = vmatprep.subr.mxu0 0.0
      %226 = vmatpush1.msra.mxu0 0.0
      %227 = vmatprep.subr.mxu0 0.0
      %228 = vmatpush1.msra.mxu0 0.0
      %229 = vmatprep.subr.mxu0 0.0
      %230 = vmatpush1.msra.mxu0 0.0
      %231 = vmatprep.subr.mxu0 0.0
      %232 = vmatpush1.msra.mxu0 0.0
      %233 = vmatprep.subr.mxu0 0.0
      %234 = vmatpush1.msra.mxu0 0.0
      %235 = vmatprep.subr.mxu0 0.0
      %236 = vmatpush1.msra.mxu0 0.0
      %237 = vmatprep.subr.mxu0 0.0
      %238 = vmatpush1.msra.mxu0 0.0
      %239 = vmatprep.subr.mxu0 0.0
      %240 = vmatpush1.msra.mxu0 0.0
      %241 = vmatprep.subr.mxu0 0.0
      %242 = vmatpush1.msra.mxu0 0.0
      %243 = vmatprep.subr.mxu0 0.0
      %244 = vmatpush1.msra.mxu0 0.0
      %245 = vmatprep.subr.mxu0 0.0
      %246 = vmatpush1.msra.mxu0 0.0
      %247 = vmatprep.subr.mxu0 0.0
      %248 = vmatpush1.msra.mxu0 0.0
      %249 = vmatprep.subr.mxu0 0.0
      %250 = vmatpush1.msra.mxu0 0.0
      %251 = vmatprep.subr.mxu0 0.0
      %252 = vmatpush1.msra.mxu0 0.0
      %253 = vmatprep.subr.mxu0 0.0
      %254 = vmatpush1.msra.mxu0 0.0
      %255 = vmatprep.subr.mxu0 0.0
      %256 = vmatpush1.msra.mxu0 0.0
      %257 = vmatprep.subr.mxu0 0.0
      %258 = vmatpush1.msra.mxu0 0.0
      %259 = vmatprep.subr.mxu0 0.0
      %260 = vmatpush1.msra.mxu0 0.0
      %261 = vmatprep.subr.mxu0 0.0
      %262 = vmatpush1.msra.mxu0 0.0
      %263 = vmatprep.subr.mxu0 0.0
      %264 = vmatpush1.msra.mxu0 0.0
      %265 = vmatprep.subr.mxu0 0.0
      %266 = vmatpush1.msra.mxu0 0.0
      %267 = vmatprep.subr.mxu0 0.0
      %268 = vmatpush1.msra.mxu0 0.0
      %269 = vmatprep.subr.mxu0 0.0
      %270 = vmatpush1.msra.mxu0 0.0
      %271 = vmatprep.subr.mxu0 0.0
      %272 = vmatpush1.msra.mxu0 0.0
      %273 = vmatprep.subr.mxu0 0.0
      %274 = vmatpush1.msra.mxu0 0.0
      %275 = vmatprep.subr.mxu0 0.0
      %276 = vmatpush1.msra.mxu0 0.0
      %277 = vmatprep.subr.mxu0 0.0
      %278 = vmatpush1.msra.mxu0 0.0
      %279 = vmatprep.mubr.f32.mxu0 0.0
      %280 = vmatmul.mubr.f32.gmra.mrb[0].mxu0 %v213
      %v281 = vpop.f32.mrb[0].mxu0
      %v282 = vadd.f32 %v209, %v281
      %v283 = vpop.f32.mrb[0].mxu0
      %284 = vdwg.mxu0
      %vm285 = vcmask 31744
      %286 = vst.msk [vmem:[%s199] sm:$0xff] %vm285, %v282
      %p287 = scmp.lt.s32.totalorder %s18, 1
      %s288 = scalar_select %p287, %s18, 1
      %p289 = scmp.lt.s32.totalorder %s19, 0
      %s290 = scalar_select %p289, %s19, 0
      %s291 = sadd.s32 %s290, %s288
      %s292 = smul.addr %s291, 8
      %s293 = scalar_lea.vmem %s3, %s292
      // Predicated region
      $region33: #{injector_net_forward.9} parent=31 // pred_check
        %p294 = pneg %p116
      $region34: #{injector_net_forward.9} parent=31 // pred_check_branch
        %296 = sbr.rel (%p294) target = $region36
      $region35: #{injector_net_forward.9} parent=31 // pred_region
        _
      $region36: #{injector_net_forward.9} parent=31 // pred_fallthru
        _
    $region32: #{injector_net_forward.9} parent=5 // pred_fallthru
      _
    %p297 = scmp.le.s32.totalorder 2, %s9
    // Predicated region
    $region37: #{injector_net_forward.9} parent=5 // pred_check
      %p298 = pneg %p297
    $region38: #{injector_net_forward.9} parent=5 // pred_check_branch
      %300 = sbr.rel (%p298) target = $region40
    $region39: #{injector_net_forward.9} parent=5 // pred_region
      %s301 = ssub.s32 %s9, 2
      // Predicated region
      $region41: #{injector_net_forward.9} parent=39 // pred_check
        %p302 = pneg %p122
      $region42: #{injector_net_forward.9} parent=39 // pred_check_branch
        %304 = sbr.rel (%p302) target = $region44
      $region43: #{injector_net_forward.9} parent=39 // pred_region
        %p305 = scmp.lt.s32.totalorder %s20, 1
        %s306 = scalar_select %p305, %s20, 1
        %p307 = scmp.lt.s32.totalorder %s21, 0
        %s308 = scalar_select %p307, %s21, 0
        %s309 = sadd.s32 %s308, %s306
        %s310 = smul.addr %s309, 8
        %s311 = scalar_lea.vmem %s3, %s310
      $region44: #{injector_net_forward.9} parent=39 // pred_fallthru
        _
    $region40: #{injector_net_forward.9} parent=5 // pred_fallthru
      _
  $region6: #{injector_net_forward.9} parent=0 // loop_footer
    %s13 = sadd.s32 1, %s9
  $region7: #{injector_net_forward.9} parent=0 // loop_footer_branch
    %8 = sbr.rel target = $region3
  $region8: #{injector_net_forward.9} parent=0 // loop_exit
    _

</llo_original>
